<compile_context>
chip_gen: v6e
topology: v6e:2x2x1
jax: 0.10.0
libtpu: 0.0.40
codegen_flags: <defaults>
</compile_context>

<pallas_src>
import jax
import jax.numpy as jnp
from jax.experimental import pallas as pl
from jax.experimental.pallas import tpu as pltpu


def lstm_decoder_kernel(
    g0_ref,    # (TC, Bp, 4H) f32  precomputed layer-0 input gates: x@Wih0^T + b0
    h0_ref,    # (L, Bp, H)   f32  initial hidden
    c0_ref,    # (L, Bp, H)   f32  initial cell
    whh0_ref,  # (H, 4H)      bf16 layer-0 recurrent weights (pre-transposed)
    w1_ref,    # (2H, 4H)     bf16 layer-1 fused [Wih1^T ; Whh1^T]
    b1_ref,    # (1, 4H)      f32  layer-1 bias (b_ih + b_hh)
    out_ref,   # (TC, Bp, H)  f32  layer-1 hidden per step for this chunk
    hn_ref,    # (L, Bp, H)   f32  final hidden
    cn_ref,    # (L, Bp, H)   f32  final cell
    h_st,      # VMEM (L, Bp, H) f32  carried hidden state
    c_st,      # VMEM (L, Bp, H) f32  carried cell state
):
    chunk = pl.program_id(0)

    @pl.when(chunk == 0)
    def _():
        h_st[...] = h0_ref[...]
        c_st[...] = c0_ref[...]

    tc = out_ref.shape[0]
    bp = out_ref.shape[1]
    hsz = out_ref.shape[2]

    # Hoist grid-invariant loads / broadcasts out of the unrolled time loop.
    whh0 = whh0_ref[...]                                  # (H, 4H)  bf16
    w1 = w1_ref[...]                                      # (2H, 4H) bf16
    b1 = jnp.broadcast_to(b1_ref[...], (bp, 4 * hsz))     # (Bp, 4H) f32

    def gates_to_hc(gates, c_prev):
        # PyTorch gate order [i, f, g, o]; f32 nonlinearities / state update.
        i_g = jax.nn.sigmoid(gates[:, 0 * hsz:1 * hsz])
        f_g = jax.nn.sigmoid(gates[:, 1 * hsz:2 * hsz])
        g_g = jnp.tanh(gates[:, 2 * hsz:3 * hsz])
        o_g = jax.nn.sigmoid(gates[:, 3 * hsz:4 * hsz])
        c_new = f_g * c_prev + i_g * g_g
        h_new = o_g * jnp.tanh(c_new)
        return h_new, c_new

    # Chunk-carried state (numlayers == 2 assumed, as in the default config).
    h0l = h_st[0]
    c0l = c_st[0]
    h1l = h_st[1]
    c1l = c_st[1]

    # Fully unrolled inner time loop over the static chunk length TC.
    for tt in range(tc):
        # Layer 0: input projection precomputed outside the recurrence; only
        # the recurrent matmul remains on the sequential critical path.
        g0 = g0_ref[tt] + jnp.dot(
            h0l.astype(jnp.bfloat16), whh0, preferred_element_type=jnp.float32)
        h0l, c0l = gates_to_hc(g0, c0l)

        # Layer 1: single fused matmul over [x, h_prev]; inter-layer dropout
        # is identity in eval mode.
        xh = jnp.concatenate([h0l, h1l], axis=-1).astype(jnp.bfloat16)
        g1 = jnp.dot(xh, w1, preferred_element_type=jnp.float32) + b1
        h1l, c1l = gates_to_hc(g1, c1l)

        out_ref[tt] = h1l

    # Carry to next chunk; also keep h_n/c_n valid after every chunk so the
    # final-state outputs are correct regardless of grid/blocking changes.
    h_st[0] = h0l
    c_st[0] = c0l
    h_st[1] = h1l
    c_st[1] = c1l
    hn_ref[0] = h0l
    cn_ref[0] = c0l
    hn_ref[1] = h1l
    cn_ref[1] = c1l


def _pick_time_chunk(seqlen, max_chunk=32):
    """Largest divisor of seqlen that is <= max_chunk."""
    for tc in range(min(seqlen, max_chunk), 0, -1):
        if seqlen % tc == 0:
            return tc
    return 1


@jax.jit
def rnn_decoder_forward(xs, params, h0, c0):
    """RNNDecoder.forward for attn_type='none', attn_time='pre', eval mode.

    xs: (B, T) int32 token ids.
    Returns (output[B, T, H], (h_n[L, B, H], c_n[L, B, H])).
    """
    emb = params["embedding"]                  # (V, E), row 0 is padding_idx
    B, T = xs.shape
    E = emb.shape[1]
    H = params["w_hh_l0"].shape[1]
    L = h0.shape[0]
    assert L == 2, "kernel is specialized to the default numlayers=2"

    Bp = max(8, -(-B // 8) * 8)                # pad batch to full sublanes
    TC = _pick_time_chunk(T)

    # --- glue: embedding lookup (dropout = identity; attention = no-op) ---
    xes = jnp.take(emb, xs, axis=0)            # (B, T, E)

    # --- glue: weight prep (transpose, merge biases, fuse layer-1, bf16) ---
    wih0_t = params["w_ih_l0"].T                                  # (E, 4H) f32
    whh0_t = params["w_hh_l0"].T.astype(jnp.bfloat16)             # (H, 4H)
    b0 = params["b_ih_l0"] + params["b_hh_l0"]                    # (4H,)
    w1 = jnp.concatenate(
        [params["w_ih_l1"].T, params["w_hh_l1"].T], axis=0
    ).astype(jnp.bfloat16)                                        # (2H, 4H)
    b1 = (params["b_ih_l1"] + params["b_hh_l1"]).reshape(1, 4 * H)

    # --- hoisted layer-0 input projection: one parallel matmul for all T ---
    g0 = jnp.dot(xes.reshape(B * T, E), wih0_t,
                 preferred_element_type=jnp.float32) + b0         # (B*T, 4H)
    g0 = g0.reshape(B, T, 4 * H).transpose(1, 0, 2)               # (T, B, 4H)
    g0 = jnp.zeros((T, Bp, 4 * H), jnp.float32).at[:, :B].set(g0)

    h0p = jnp.zeros((L, Bp, H), jnp.float32).at[:, :B].set(h0)
    c0p = jnp.zeros((L, Bp, H), jnp.float32).at[:, :B].set(c0)

    out_tm, h_n, c_n = pl.pallas_call(
        lstm_decoder_kernel,
        out_shape=(
            jax.ShapeDtypeStruct((T, Bp, H), jnp.float32),
            jax.ShapeDtypeStruct((L, Bp, H), jnp.float32),
            jax.ShapeDtypeStruct((L, Bp, H), jnp.float32),
        ),
        grid_spec=pltpu.PrefetchScalarGridSpec(
            num_scalar_prefetch=0,
            grid=(T // TC,),
            in_specs=[
                pl.BlockSpec((TC, Bp, 4 * H), lambda c: (c, 0, 0)),  # g0 chunk
                pl.BlockSpec((L, Bp, H), lambda c: (0, 0, 0)),       # h0
                pl.BlockSpec((L, Bp, H), lambda c: (0, 0, 0)),       # c0
                pl.BlockSpec((H, 4 * H), lambda c: (0, 0)),          # whh0^T
                pl.BlockSpec((2 * H, 4 * H), lambda c: (0, 0)),      # fused w1
                pl.BlockSpec((1, 4 * H), lambda c: (0, 0)),          # b1
            ],
            out_specs=[
                pl.BlockSpec((TC, Bp, H), lambda c: (c, 0, 0)),      # out chunk
                pl.BlockSpec((L, Bp, H), lambda c: (0, 0, 0)),       # h_n
                pl.BlockSpec((L, Bp, H), lambda c: (0, 0, 0)),       # c_n
            ],
            scratch_shapes=[
                pltpu.VMEM((L, Bp, H), jnp.float32),                 # h carry
                pltpu.VMEM((L, Bp, H), jnp.float32),                 # c carry
            ],
        ),
        compiler_params=pltpu.CompilerParams(
            dimension_semantics=("arbitrary",),   # time is inherently sequential
            vmem_limit_bytes=32 * 1024 * 1024,
        ),
    )(g0, h0p, c0p, whh0_t, w1, b1)

    output = jnp.transpose(out_tm[:, :B, :], (1, 0, 2))   # batch-first (B, T, H)
    return output, (h_n[:, :B, :], c_n[:, :B, :])


def init_params(key, num_features, esz, hsz):
    """Deterministic synthetic parameters matching nn.Embedding + 2-layer nn.LSTM."""
    ks = jax.random.split(key, 9)
    bound = 1.0 / jnp.sqrt(hsz)

    def uni(k, shape):
        return jax.random.uniform(k, shape, jnp.float32, -bound, bound)

    emb = jax.random.normal(ks[0], (num_features, esz), jnp.float32) * 0.1
    emb = emb.at[0].set(0.0)  # padding_idx=0
    return {
        "embedding": emb,
        "w_ih_l0": uni(ks[1], (4 * hsz, esz)),
        "w_hh_l0": uni(ks[2], (4 * hsz, hsz)),
        "b_ih_l0": uni(ks[3], (4 * hsz,)),
        "b_hh_l0": uni(ks[4], (4 * hsz,)),
        "w_ih_l1": uni(ks[5], (4 * hsz, hsz)),
        "w_hh_l1": uni(ks[6], (4 * hsz, hsz)),
        "b_ih_l1": uni(ks[7], (4 * hsz,)),
        "b_hh_l1": uni(ks[8], (4 * hsz,)),
    }


if __name__ == "__main__":
    # Small shapes consistent with the module's forward.
    num_features = 50   # vocab size
    esz = 32            # embeddingsize
    hsz = 32            # hiddensize
    numlayers = 2
    bsz = 2
    seqlen = 8

    key = jax.random.PRNGKey(0)
    pkey, xkey = jax.random.split(key)
    params = init_params(pkey, num_features, esz, hsz)

    xs = jax.random.randint(xkey, (bsz, seqlen), 0, num_features, dtype=jnp.int32)
    # hidden=None in the PyTorch module -> zero-initialized (h0, c0)
    h0 = jnp.zeros((numlayers, bsz, hsz), jnp.float32)
    c0 = jnp.zeros((numlayers, bsz, hsz), jnp.float32)

    output, (h_n, c_n) = rnn_decoder_forward(xs, params, h0, c0)
    jax.block_until_ready((output, h_n, c_n))

    assert output.shape == (bsz, seqlen, hsz)
    assert h_n.shape == (numlayers, bsz, hsz)
    assert c_n.shape == (numlayers, bsz, hsz)
    print("KERNEL_OK")
</pallas_src>

<mosaic_0001>
module attributes {stable_mosaic.version = 11 : i64} {
  func.func @lstm_decoder_kernel(%arg0: i32, %arg1: memref<8x8x128xf32, #tpu.memory_space<vmem>>, %arg2: memref<2x8x32xf32, #tpu.memory_space<vmem>>, %arg3: memref<2x8x32xf32, #tpu.memory_space<vmem>>, %arg4: memref<32x128xbf16, #tpu.memory_space<vmem>>, %arg5: memref<64x128xbf16, #tpu.memory_space<vmem>>, %arg6: memref<1x128xf32, #tpu.memory_space<vmem>>, %arg7: memref<8x8x32xf32, #tpu.memory_space<vmem>>, %arg8: memref<2x8x32xf32, #tpu.memory_space<vmem>>, %arg9: memref<2x8x32xf32, #tpu.memory_space<vmem>>, %arg10: memref<2x8x32xf32, #tpu.memory_space<vmem>>, %arg11: memref<2x8x32xf32, #tpu.memory_space<vmem>>) attributes {dimension_semantics = [#tpu.dimension_semantics<arbitrary>], iteration_bounds = array<i64: 1>, scalar_prefetch = 0 : i64, scratch_operands = 2 : i64, tpu.core_type = #tpu.core_type<tc>, window_params = [{transform_indices = @transform_0, window_bounds = array<i64: 8, 8, 128>}, {pipeline_mode = #tpu.pipeline_mode<synchronous>, transform_indices = @transform_1, window_bounds = array<i64: 2, 8, 32>}, {pipeline_mode = #tpu.pipeline_mode<synchronous>, transform_indices = @transform_2, window_bounds = array<i64: 2, 8, 32>}, {pipeline_mode = #tpu.pipeline_mode<synchronous>, transform_indices = @transform_3, window_bounds = array<i64: 32, 128>}, {pipeline_mode = #tpu.pipeline_mode<synchronous>, transform_indices = @transform_4, window_bounds = array<i64: 64, 128>}, {pipeline_mode = #tpu.pipeline_mode<synchronous>, transform_indices = @transform_5, window_bounds = array<i64: 1, 128>}, {transform_indices = @transform_6, window_bounds = array<i64: 8, 8, 32>}, {pipeline_mode = #tpu.pipeline_mode<synchronous>, transform_indices = @transform_7, window_bounds = array<i64: 2, 8, 32>}, {pipeline_mode = #tpu.pipeline_mode<synchronous>, transform_indices = @transform_8, window_bounds = array<i64: 2, 8, 32>}]} {
    %c0_i32 = arith.constant 0 : i32
    %0 = arith.cmpi eq, %arg0, %c0_i32 : i32
    %1 = arith.extui %0 : i1 to i32
    %c0_i32_0 = arith.constant 0 : i32
    %2 = arith.cmpi ne, %1, %c0_i32_0 : i32
    scf.if %2 {
      %c0_146 = arith.constant 0 : index
      %c0_147 = arith.constant 0 : index
      %c0_148 = arith.constant 0 : index
      %536 = vector.load %arg2[%c0_146, %c0_147, %c0_148] : memref<2x8x32xf32, #tpu.memory_space<vmem>>, vector<2x8x32xf32>
      %c0_149 = arith.constant 0 : index
      %c0_150 = arith.constant 0 : index
      %c0_151 = arith.constant 0 : index
      %537 = vector.load %arg10[%c0_149, %c0_150, %c0_151] : memref<2x8x32xf32, #tpu.memory_space<vmem>>, vector<2x8x32xf32>
      tpu.vector_store %arg10[%c0_149, %c0_150, %c0_151], %536 {strides = array<i32>} : memref<2x8x32xf32, #tpu.memory_space<vmem>>, vector<2x8x32xf32>,
      %c0_152 = arith.constant 0 : index
      %c0_153 = arith.constant 0 : index
      %c0_154 = arith.constant 0 : index
      %538 = vector.load %arg3[%c0_152, %c0_153, %c0_154] : memref<2x8x32xf32, #tpu.memory_space<vmem>>, vector<2x8x32xf32>
      %c0_155 = arith.constant 0 : index
      %c0_156 = arith.constant 0 : index
      %c0_157 = arith.constant 0 : index
      %539 = vector.load %arg11[%c0_155, %c0_156, %c0_157] : memref<2x8x32xf32, #tpu.memory_space<vmem>>, vector<2x8x32xf32>
      tpu.vector_store %arg11[%c0_155, %c0_156, %c0_157], %538 {strides = array<i32>} : memref<2x8x32xf32, #tpu.memory_space<vmem>>, vector<2x8x32xf32>,
    } else {
    }
    %c0 = arith.constant 0 : index
    %c0_1 = arith.constant 0 : index
    %3 = vector.load %arg4[%c0, %c0_1] : memref<32x128xbf16, #tpu.memory_space<vmem>>, vector<32x128xbf16>
    %c0_2 = arith.constant 0 : index
    %c0_3 = arith.constant 0 : index
    %4 = vector.load %arg5[%c0_2, %c0_3] : memref<64x128xbf16, #tpu.memory_space<vmem>>, vector<64x128xbf16>
    %c0_4 = arith.constant 0 : index
    %c0_5 = arith.constant 0 : index
    %5 = vector.load %arg6[%c0_4, %c0_5] : memref<1x128xf32, #tpu.memory_space<vmem>>, vector<1x128xf32>
    %6 = vector.shape_cast %5 : vector<1x128xf32> to vector<1x128xf32>
    %7 = vector.broadcast %6 : vector<1x128xf32> to vector<8x128xf32>
    %c0_6 = arith.constant 0 : index
    %c0_7 = arith.constant 0 : index
    %c0_8 = arith.constant 0 : index
    %8 = vector.load %arg10[%c0_6, %c0_7, %c0_8] : memref<2x8x32xf32, #tpu.memory_space<vmem>>, vector<1x8x32xf32>
    %9 = vector.shape_cast %8 : vector<1x8x32xf32> to vector<8x32xf32>
    %c0_9 = arith.constant 0 : index
    %c0_10 = arith.constant 0 : index
    %c0_11 = arith.constant 0 : index
    %10 = vector.load %arg11[%c0_9, %c0_10, %c0_11] : memref<2x8x32xf32, #tpu.memory_space<vmem>>, vector<1x8x32xf32>
    %11 = vector.shape_cast %10 : vector<1x8x32xf32> to vector<8x32xf32>
    %c1 = arith.constant 1 : index
    %c0_12 = arith.constant 0 : index
    %c0_13 = arith.constant 0 : index
    %12 = vector.load %arg10[%c1, %c0_12, %c0_13] : memref<2x8x32xf32, #tpu.memory_space<vmem>>, vector<1x8x32xf32>
    %13 = vector.shape_cast %12 : vector<1x8x32xf32> to vector<8x32xf32>
    %c1_14 = arith.constant 1 : index
    %c0_15 = arith.constant 0 : index
    %c0_16 = arith.constant 0 : index
    %14 = vector.load %arg11[%c1_14, %c0_15, %c0_16] : memref<2x8x32xf32, #tpu.memory_space<vmem>>, vector<1x8x32xf32>
    %15 = vector.shape_cast %14 : vector<1x8x32xf32> to vector<8x32xf32>
    %c0_17 = arith.constant 0 : index
    %c0_18 = arith.constant 0 : index
    %c0_19 = arith.constant 0 : index
    %16 = vector.load %arg1[%c0_17, %c0_18, %c0_19] : memref<8x8x128xf32, #tpu.memory_space<vmem>>, vector<1x8x128xf32>
    %17 = vector.shape_cast %16 : vector<1x8x128xf32> to vector<8x128xf32>
    %18 = arith.truncf %9 : vector<8x32xf32> to vector<8x32xbf16>
    %cst = arith.constant dense<0.000000e+00> : vector<8x128xf32>
    %19 = tpu.matmul %18, %3, %cst {dimension_numbers = #tpu.dot_dimension_numbers<[1], [0], [0], [1], [0, 0, 1, 1], [], []>} : vector<8x32xbf16>, vector<32x128xbf16>, vector<8x128xf32> -> vector<8x128xf32>
    %20 = arith.addf %17, %19 : vector<8x128xf32>
    %21 = vector.extract_strided_slice %20 {offsets = [0, 0], sizes = [8, 32], strides = [1, 1]} : vector<8x128xf32> to vector<8x32xf32>
    %22 = arith.negf %21 : vector<8x32xf32>
    %23 = math.exp %22 : vector<8x32xf32>
    %cst_20 = arith.constant 1.000000e+00 : f32
    %24 = vector.broadcast %cst_20 : f32 to vector<8x32xf32>
    %25 = arith.addf %24, %23 : vector<8x32xf32>
    %26 = arith.divf %24, %25 : vector<8x32xf32>
    %27 = vector.extract_strided_slice %20 {offsets = [0, 32], sizes = [8, 32], strides = [1, 1]} : vector<8x128xf32> to vector<8x32xf32>
    %28 = arith.negf %27 : vector<8x32xf32>
    %29 = math.exp %28 : vector<8x32xf32>
    %cst_21 = arith.constant 1.000000e+00 : f32
    %30 = vector.broadcast %cst_21 : f32 to vector<8x32xf32>
    %31 = arith.addf %30, %29 : vector<8x32xf32>
    %32 = arith.divf %30, %31 : vector<8x32xf32>
    %33 = vector.extract_strided_slice %20 {offsets = [0, 64], sizes = [8, 32], strides = [1, 1]} : vector<8x128xf32> to vector<8x32xf32>
    %34 = math.tanh %33 : vector<8x32xf32>
    %35 = vector.extract_strided_slice %20 {offsets = [0, 96], sizes = [8, 32], strides = [1, 1]} : vector<8x128xf32> to vector<8x32xf32>
    %36 = arith.negf %35 : vector<8x32xf32>
    %37 = math.exp %36 : vector<8x32xf32>
    %cst_22 = arith.constant 1.000000e+00 : f32
    %38 = vector.broadcast %cst_22 : f32 to vector<8x32xf32>
    %39 = arith.addf %38, %37 : vector<8x32xf32>
    %40 = arith.divf %38, %39 : vector<8x32xf32>
    %41 = arith.mulf %32, %11 : vector<8x32xf32>
    %42 = arith.mulf %26, %34 : vector<8x32xf32>
    %43 = arith.addf %41, %42 : vector<8x32xf32>
    %44 = math.tanh %43 : vector<8x32xf32>
    %45 = arith.mulf %40, %44 : vector<8x32xf32>
    %46 = tpu.concatenate %45, %13 in 1 : vector<8x32xf32>, vector<8x32xf32> -> vector<8x64xf32>
    %47 = arith.truncf %46 : vector<8x64xf32> to vector<8x64xbf16>
    %cst_23 = arith.constant dense<0.000000e+00> : vector<8x128xf32>
    %48 = tpu.matmul %47, %4, %cst_23 {dimension_numbers = #tpu.dot_dimension_numbers<[1], [0], [0], [1], [0, 0, 1, 1], [], []>} : vector<8x64xbf16>, vector<64x128xbf16>, vector<8x128xf32> -> vector<8x128xf32>
    %49 = arith.addf %48, %7 : vector<8x128xf32>
    %50 = vector.extract_strided_slice %49 {offsets = [0, 0], sizes = [8, 32], strides = [1, 1]} : vector<8x128xf32> to vector<8x32xf32>
    %51 = arith.negf %50 : vector<8x32xf32>
    %52 = math.exp %51 : vector<8x32xf32>
    %cst_24 = arith.constant 1.000000e+00 : f32
    %53 = vector.broadcast %cst_24 : f32 to vector<8x32xf32>
    %54 = arith.addf %53, %52 : vector<8x32xf32>
    %55 = arith.divf %53, %54 : vector<8x32xf32>
    %56 = vector.extract_strided_slice %49 {offsets = [0, 32], sizes = [8, 32], strides = [1, 1]} : vector<8x128xf32> to vector<8x32xf32>
    %57 = arith.negf %56 : vector<8x32xf32>
    %58 = math.exp %57 : vector<8x32xf32>
    %cst_25 = arith.constant 1.000000e+00 : f32
    %59 = vector.broadcast %cst_25 : f32 to vector<8x32xf32>
    %60 = arith.addf %59, %58 : vector<8x32xf32>
    %61 = arith.divf %59, %60 : vector<8x32xf32>
    %62 = vector.extract_strided_slice %49 {offsets = [0, 64], sizes = [8, 32], strides = [1, 1]} : vector<8x128xf32> to vector<8x32xf32>
    %63 = math.tanh %62 : vector<8x32xf32>
    %64 = vector.extract_strided_slice %49 {offsets = [0, 96], sizes = [8, 32], strides = [1, 1]} : vector<8x128xf32> to vector<8x32xf32>
    %65 = arith.negf %64 : vector<8x32xf32>
    %66 = math.exp %65 : vector<8x32xf32>
    %cst_26 = arith.constant 1.000000e+00 : f32
    %67 = vector.broadcast %cst_26 : f32 to vector<8x32xf32>
    %68 = arith.addf %67, %66 : vector<8x32xf32>
    %69 = arith.divf %67, %68 : vector<8x32xf32>
    %70 = arith.mulf %61, %15 : vector<8x32xf32>
    %71 = arith.mulf %55, %63 : vector<8x32xf32>
    %72 = arith.addf %70, %71 : vector<8x32xf32>
    %73 = math.tanh %72 : vector<8x32xf32>
    %74 = arith.mulf %69, %73 : vector<8x32xf32>
    %c0_27 = arith.constant 0 : index
    %c0_28 = arith.constant 0 : index
    %c0_29 = arith.constant 0 : index
    %75 = vector.load %arg7[%c0_27, %c0_28, %c0_29] : memref<8x8x32xf32, #tpu.memory_space<vmem>>, vector<1x8x32xf32>
    %76 = vector.shape_cast %75 : vector<1x8x32xf32> to vector<8x32xf32>
    %77 = vector.shape_cast %74 : vector<8x32xf32> to vector<1x8x32xf32>
    tpu.vector_store %arg7[%c0_27, %c0_28, %c0_29], %77 {strides = array<i32>} : memref<8x8x32xf32, #tpu.memory_space<vmem>>, vector<1x8x32xf32>,
    %c1_30 = arith.constant 1 : index
    %c0_31 = arith.constant 0 : index
    %c0_32 = arith.constant 0 : index
    %78 = vector.load %arg1[%c1_30, %c0_31, %c0_32] : memref<8x8x128xf32, #tpu.memory_space<vmem>>, vector<1x8x128xf32>
    %79 = vector.shape_cast %78 : vector<1x8x128xf32> to vector<8x128xf32>
    %80 = arith.truncf %45 : vector<8x32xf32> to vector<8x32xbf16>
    %cst_33 = arith.constant dense<0.000000e+00> : vector<8x128xf32>
    %81 = tpu.matmul %80, %3, %cst_33 {dimension_numbers = #tpu.dot_dimension_numbers<[1], [0], [0], [1], [0, 0, 1, 1], [], []>} : vector<8x32xbf16>, vector<32x128xbf16>, vector<8x128xf32> -> vector<8x128xf32>
    %82 = arith.addf %79, %81 : vector<8x128xf32>
    %83 = vector.extract_strided_slice %82 {offsets = [0, 0], sizes = [8, 32], strides = [1, 1]} : vector<8x128xf32> to vector<8x32xf32>
    %84 = arith.negf %83 : vector<8x32xf32>
    %85 = math.exp %84 : vector<8x32xf32>
    %cst_34 = arith.constant 1.000000e+00 : f32
    %86 = vector.broadcast %cst_34 : f32 to vector<8x32xf32>
    %87 = arith.addf %86, %85 : vector<8x32xf32>
    %88 = arith.divf %86, %87 : vector<8x32xf32>
    %89 = vector.extract_strided_slice %82 {offsets = [0, 32], sizes = [8, 32], strides = [1, 1]} : vector<8x128xf32> to vector<8x32xf32>
    %90 = arith.negf %89 : vector<8x32xf32>
    %91 = math.exp %90 : vector<8x32xf32>
    %cst_35 = arith.constant 1.000000e+00 : f32
    %92 = vector.broadcast %cst_35 : f32 to vector<8x32xf32>
    %93 = arith.addf %92, %91 : vector<8x32xf32>
    %94 = arith.divf %92, %93 : vector<8x32xf32>
    %95 = vector.extract_strided_slice %82 {offsets = [0, 64], sizes = [8, 32], strides = [1, 1]} : vector<8x128xf32> to vector<8x32xf32>
    %96 = math.tanh %95 : vector<8x32xf32>
    %97 = vector.extract_strided_slice %82 {offsets = [0, 96], sizes = [8, 32], strides = [1, 1]} : vector<8x128xf32> to vector<8x32xf32>
    %98 = arith.negf %97 : vector<8x32xf32>
    %99 = math.exp %98 : vector<8x32xf32>
    %cst_36 = arith.constant 1.000000e+00 : f32
    %100 = vector.broadcast %cst_36 : f32 to vector<8x32xf32>
    %101 = arith.addf %100, %99 : vector<8x32xf32>
    %102 = arith.divf %100, %101 : vector<8x32xf32>
    %103 = arith.mulf %94, %43 : vector<8x32xf32>
    %104 = arith.mulf %88, %96 : vector<8x32xf32>
    %105 = arith.addf %103, %104 : vector<8x32xf32>
    %106 = math.tanh %105 : vector<8x32xf32>
    %107 = arith.mulf %102, %106 : vector<8x32xf32>
    %108 = tpu.concatenate %107, %74 in 1 : vector<8x32xf32>, vector<8x32xf32> -> vector<8x64xf32>
    %109 = arith.truncf %108 : vector<8x64xf32> to vector<8x64xbf16>
    %cst_37 = arith.constant dense<0.000000e+00> : vector<8x128xf32>
    %110 = tpu.matmul %109, %4, %cst_37 {dimension_numbers = #tpu.dot_dimension_numbers<[1], [0], [0], [1], [0, 0, 1, 1], [], []>} : vector<8x64xbf16>, vector<64x128xbf16>, vector<8x128xf32> -> vector<8x128xf32>
    %111 = arith.addf %110, %7 : vector<8x128xf32>
    %112 = vector.extract_strided_slice %111 {offsets = [0, 0], sizes = [8, 32], strides = [1, 1]} : vector<8x128xf32> to vector<8x32xf32>
    %113 = arith.negf %112 : vector<8x32xf32>
    %114 = math.exp %113 : vector<8x32xf32>
    %cst_38 = arith.constant 1.000000e+00 : f32
    %115 = vector.broadcast %cst_38 : f32 to vector<8x32xf32>
    %116 = arith.addf %115, %114 : vector<8x32xf32>
    %117 = arith.divf %115, %116 : vector<8x32xf32>
    %118 = vector.extract_strided_slice %111 {offsets = [0, 32], sizes = [8, 32], strides = [1, 1]} : vector<8x128xf32> to vector<8x32xf32>
    %119 = arith.negf %118 : vector<8x32xf32>
    %120 = math.exp %119 : vector<8x32xf32>
    %cst_39 = arith.constant 1.000000e+00 : f32
    %121 = vector.broadcast %cst_39 : f32 to vector<8x32xf32>
    %122 = arith.addf %121, %120 : vector<8x32xf32>
    %123 = arith.divf %121, %122 : vector<8x32xf32>
    %124 = vector.extract_strided_slice %111 {offsets = [0, 64], sizes = [8, 32], strides = [1, 1]} : vector<8x128xf32> to vector<8x32xf32>
    %125 = math.tanh %124 : vector<8x32xf32>
    %126 = vector.extract_strided_slice %111 {offsets = [0, 96], sizes = [8, 32], strides = [1, 1]} : vector<8x128xf32> to vector<8x32xf32>
    %127 = arith.negf %126 : vector<8x32xf32>
    %128 = math.exp %127 : vector<8x32xf32>
    %cst_40 = arith.constant 1.000000e+00 : f32
    %129 = vector.broadcast %cst_40 : f32 to vector<8x32xf32>
    %130 = arith.addf %129, %128 : vector<8x32xf32>
    %131 = arith.divf %129, %130 : vector<8x32xf32>
    %132 = arith.mulf %123, %72 : vector<8x32xf32>
    %133 = arith.mulf %117, %125 : vector<8x32xf32>
    %134 = arith.addf %132, %133 : vector<8x32xf32>
    %135 = math.tanh %134 : vector<8x32xf32>
    %136 = arith.mulf %131, %135 : vector<8x32xf32>
    %c1_41 = arith.constant 1 : index
    %c0_42 = arith.constant 0 : index
    %c0_43 = arith.constant 0 : index
    %137 = vector.load %arg7[%c1_41, %c0_42, %c0_43] : memref<8x8x32xf32, #tpu.memory_space<vmem>>, vector<1x8x32xf32>
    %138 = vector.shape_cast %137 : vector<1x8x32xf32> to vector<8x32xf32>
    %139 = vector.shape_cast %136 : vector<8x32xf32> to vector<1x8x32xf32>
    tpu.vector_store %arg7[%c1_41, %c0_42, %c0_43], %139 {strides = array<i32>} : memref<8x8x32xf32, #tpu.memory_space<vmem>>, vector<1x8x32xf32>,
    %c2 = arith.constant 2 : index
    %c0_44 = arith.constant 0 : index
    %c0_45 = arith.constant 0 : index
    %140 = vector.load %arg1[%c2, %c0_44, %c0_45] : memref<8x8x128xf32, #tpu.memory_space<vmem>>, vector<1x8x128xf32>
    %141 = vector.shape_cast %140 : vector<1x8x128xf32> to vector<8x128xf32>
    %142 = arith.truncf %107 : vector<8x32xf32> to vector<8x32xbf16>
    %cst_46 = arith.constant dense<0.000000e+00> : vector<8x128xf32>
    %143 = tpu.matmul %142, %3, %cst_46 {dimension_numbers = #tpu.dot_dimension_numbers<[1], [0], [0], [1], [0, 0, 1, 1], [], []>} : vector<8x32xbf16>, vector<32x128xbf16>, vector<8x128xf32> -> vector<8x128xf32>
    %144 = arith.addf %141, %143 : vector<8x128xf32>
    %145 = vector.extract_strided_slice %144 {offsets = [0, 0], sizes = [8, 32], strides = [1, 1]} : vector<8x128xf32> to vector<8x32xf32>
    %146 = arith.negf %145 : vector<8x32xf32>
    %147 = math.exp %146 : vector<8x32xf32>
    %cst_47 = arith.constant 1.000000e+00 : f32
    %148 = vector.broadcast %cst_47 : f32 to vector<8x32xf32>
    %149 = arith.addf %148, %147 : vector<8x32xf32>
    %150 = arith.divf %148, %149 : vector<8x32xf32>
    %151 = vector.extract_strided_slice %144 {offsets = [0, 32], sizes = [8, 32], strides = [1, 1]} : vector<8x128xf32> to vector<8x32xf32>
    %152 = arith.negf %151 : vector<8x32xf32>
    %153 = math.exp %152 : vector<8x32xf32>
    %cst_48 = arith.constant 1.000000e+00 : f32
    %154 = vector.broadcast %cst_48 : f32 to vector<8x32xf32>
    %155 = arith.addf %154, %153 : vector<8x32xf32>
    %156 = arith.divf %154, %155 : vector<8x32xf32>
    %157 = vector.extract_strided_slice %144 {offsets = [0, 64], sizes = [8, 32], strides = [1, 1]} : vector<8x128xf32> to vector<8x32xf32>
    %158 = math.tanh %157 : vector<8x32xf32>
    %159 = vector.extract_strided_slice %144 {offsets = [0, 96], sizes = [8, 32], strides = [1, 1]} : vector<8x128xf32> to vector<8x32xf32>
    %160 = arith.negf %159 : vector<8x32xf32>
    %161 = math.exp %160 : vector<8x32xf32>
    %cst_49 = arith.constant 1.000000e+00 : f32
    %162 = vector.broadcast %cst_49 : f32 to vector<8x32xf32>
    %163 = arith.addf %162, %161 : vector<8x32xf32>
    %164 = arith.divf %162, %163 : vector<8x32xf32>
    %165 = arith.mulf %156, %105 : vector<8x32xf32>
    %166 = arith.mulf %150, %158 : vector<8x32xf32>
    %167 = arith.addf %165, %166 : vector<8x32xf32>
    %168 = math.tanh %167 : vector<8x32xf32>
    %169 = arith.mulf %164, %168 : vector<8x32xf32>
    %170 = tpu.concatenate %169, %136 in 1 : vector<8x32xf32>, vector<8x32xf32> -> vector<8x64xf32>
    %171 = arith.truncf %170 : vector<8x64xf32> to vector<8x64xbf16>
    %cst_50 = arith.constant dense<0.000000e+00> : vector<8x128xf32>
    %172 = tpu.matmul %171, %4, %cst_50 {dimension_numbers = #tpu.dot_dimension_numbers<[1], [0], [0], [1], [0, 0, 1, 1], [], []>} : vector<8x64xbf16>, vector<64x128xbf16>, vector<8x128xf32> -> vector<8x128xf32>
    %173 = arith.addf %172, %7 : vector<8x128xf32>
    %174 = vector.extract_strided_slice %173 {offsets = [0, 0], sizes = [8, 32], strides = [1, 1]} : vector<8x128xf32> to vector<8x32xf32>
    %175 = arith.negf %174 : vector<8x32xf32>
    %176 = math.exp %175 : vector<8x32xf32>
    %cst_51 = arith.constant 1.000000e+00 : f32
    %177 = vector.broadcast %cst_51 : f32 to vector<8x32xf32>
    %178 = arith.addf %177, %176 : vector<8x32xf32>
    %179 = arith.divf %177, %178 : vector<8x32xf32>
    %180 = vector.extract_strided_slice %173 {offsets = [0, 32], sizes = [8, 32], strides = [1, 1]} : vector<8x128xf32> to vector<8x32xf32>
    %181 = arith.negf %180 : vector<8x32xf32>
    %182 = math.exp %181 : vector<8x32xf32>
    %cst_52 = arith.constant 1.000000e+00 : f32
    %183 = vector.broadcast %cst_52 : f32 to vector<8x32xf32>
    %184 = arith.addf %183, %182 : vector<8x32xf32>
    %185 = arith.divf %183, %184 : vector<8x32xf32>
    %186 = vector.extract_strided_slice %173 {offsets = [0, 64], sizes = [8, 32], strides = [1, 1]} : vector<8x128xf32> to vector<8x32xf32>
    %187 = math.tanh %186 : vector<8x32xf32>
    %188 = vector.extract_strided_slice %173 {offsets = [0, 96], sizes = [8, 32], strides = [1, 1]} : vector<8x128xf32> to vector<8x32xf32>
    %189 = arith.negf %188 : vector<8x32xf32>
    %190 = math.exp %189 : vector<8x32xf32>
    %cst_53 = arith.constant 1.000000e+00 : f32
    %191 = vector.broadcast %cst_53 : f32 to vector<8x32xf32>
    %192 = arith.addf %191, %190 : vector<8x32xf32>
    %193 = arith.divf %191, %192 : vector<8x32xf32>
    %194 = arith.mulf %185, %134 : vector<8x32xf32>
    %195 = arith.mulf %179, %187 : vector<8x32xf32>
    %196 = arith.addf %194, %195 : vector<8x32xf32>
    %197 = math.tanh %196 : vector<8x32xf32>
    %198 = arith.mulf %193, %197 : vector<8x32xf32>
    %c2_54 = arith.constant 2 : index
    %c0_55 = arith.constant 0 : index
    %c0_56 = arith.constant 0 : index
    %199 = vector.load %arg7[%c2_54, %c0_55, %c0_56] : memref<8x8x32xf32, #tpu.memory_space<vmem>>, vector<1x8x32xf32>
    %200 = vector.shape_cast %199 : vector<1x8x32xf32> to vector<8x32xf32>
    %201 = vector.shape_cast %198 : vector<8x32xf32> to vector<1x8x32xf32>
    tpu.vector_store %arg7[%c2_54, %c0_55, %c0_56], %201 {strides = array<i32>} : memref<8x8x32xf32, #tpu.memory_space<vmem>>, vector<1x8x32xf32>,
    %c3 = arith.constant 3 : index
    %c0_57 = arith.constant 0 : index
    %c0_58 = arith.constant 0 : index
    %202 = vector.load %arg1[%c3, %c0_57, %c0_58] : memref<8x8x128xf32, #tpu.memory_space<vmem>>, vector<1x8x128xf32>
    %203 = vector.shape_cast %202 : vector<1x8x128xf32> to vector<8x128xf32>
    %204 = arith.truncf %169 : vector<8x32xf32> to vector<8x32xbf16>
    %cst_59 = arith.constant dense<0.000000e+00> : vector<8x128xf32>
    %205 = tpu.matmul %204, %3, %cst_59 {dimension_numbers = #tpu.dot_dimension_numbers<[1], [0], [0], [1], [0, 0, 1, 1], [], []>} : vector<8x32xbf16>, vector<32x128xbf16>, vector<8x128xf32> -> vector<8x128xf32>
    %206 = arith.addf %203, %205 : vector<8x128xf32>
    %207 = vector.extract_strided_slice %206 {offsets = [0, 0], sizes = [8, 32], strides = [1, 1]} : vector<8x128xf32> to vector<8x32xf32>
    %208 = arith.negf %207 : vector<8x32xf32>
    %209 = math.exp %208 : vector<8x32xf32>
    %cst_60 = arith.constant 1.000000e+00 : f32
    %210 = vector.broadcast %cst_60 : f32 to vector<8x32xf32>
    %211 = arith.addf %210, %209 : vector<8x32xf32>
    %212 = arith.divf %210, %211 : vector<8x32xf32>
    %213 = vector.extract_strided_slice %206 {offsets = [0, 32], sizes = [8, 32], strides = [1, 1]} : vector<8x128xf32> to vector<8x32xf32>
    %214 = arith.negf %213 : vector<8x32xf32>
    %215 = math.exp %214 : vector<8x32xf32>
    %cst_61 = arith.constant 1.000000e+00 : f32
    %216 = vector.broadcast %cst_61 : f32 to vector<8x32xf32>
    %217 = arith.addf %216, %215 : vector<8x32xf32>
    %218 = arith.divf %216, %217 : vector<8x32xf32>
    %219 = vector.extract_strided_slice %206 {offsets = [0, 64], sizes = [8, 32], strides = [1, 1]} : vector<8x128xf32> to vector<8x32xf32>
    %220 = math.tanh %219 : vector<8x32xf32>
    %221 = vector.extract_strided_slice %206 {offsets = [0, 96], sizes = [8, 32], strides = [1, 1]} : vector<8x128xf32> to vector<8x32xf32>
    %222 = arith.negf %221 : vector<8x32xf32>
    %223 = math.exp %222 : vector<8x32xf32>
    %cst_62 = arith.constant 1.000000e+00 : f32
    %224 = vector.broadcast %cst_62 : f32 to vector<8x32xf32>
    %225 = arith.addf %224, %223 : vector<8x32xf32>
    %226 = arith.divf %224, %225 : vector<8x32xf32>
    %227 = arith.mulf %218, %167 : vector<8x32xf32>
    %228 = arith.mulf %212, %220 : vector<8x32xf32>
    %229 = arith.addf %227, %228 : vector<8x32xf32>
    %230 = math.tanh %229 : vector<8x32xf32>
    %231 = arith.mulf %226, %230 : vector<8x32xf32>
    %232 = tpu.concatenate %231, %198 in 1 : vector<8x32xf32>, vector<8x32xf32> -> vector<8x64xf32>
    %233 = arith.truncf %232 : vector<8x64xf32> to vector<8x64xbf16>
    %cst_63 = arith.constant dense<0.000000e+00> : vector<8x128xf32>
    %234 = tpu.matmul %233, %4, %cst_63 {dimension_numbers = #tpu.dot_dimension_numbers<[1], [0], [0], [1], [0, 0, 1, 1], [], []>} : vector<8x64xbf16>, vector<64x128xbf16>, vector<8x128xf32> -> vector<8x128xf32>
    %235 = arith.addf %234, %7 : vector<8x128xf32>
    %236 = vector.extract_strided_slice %235 {offsets = [0, 0], sizes = [8, 32], strides = [1, 1]} : vector<8x128xf32> to vector<8x32xf32>
    %237 = arith.negf %236 : vector<8x32xf32>
    %238 = math.exp %237 : vector<8x32xf32>
    %cst_64 = arith.constant 1.000000e+00 : f32
    %239 = vector.broadcast %cst_64 : f32 to vector<8x32xf32>
    %240 = arith.addf %239, %238 : vector<8x32xf32>
    %241 = arith.divf %239, %240 : vector<8x32xf32>
    %242 = vector.extract_strided_slice %235 {offsets = [0, 32], sizes = [8, 32], strides = [1, 1]} : vector<8x128xf32> to vector<8x32xf32>
    %243 = arith.negf %242 : vector<8x32xf32>
    %244 = math.exp %243 : vector<8x32xf32>
    %cst_65 = arith.constant 1.000000e+00 : f32
    %245 = vector.broadcast %cst_65 : f32 to vector<8x32xf32>
    %246 = arith.addf %245, %244 : vector<8x32xf32>
    %247 = arith.divf %245, %246 : vector<8x32xf32>
    %248 = vector.extract_strided_slice %235 {offsets = [0, 64], sizes = [8, 32], strides = [1, 1]} : vector<8x128xf32> to vector<8x32xf32>
    %249 = math.tanh %248 : vector<8x32xf32>
    %250 = vector.extract_strided_slice %235 {offsets = [0, 96], sizes = [8, 32], strides = [1, 1]} : vector<8x128xf32> to vector<8x32xf32>
    %251 = arith.negf %250 : vector<8x32xf32>
    %252 = math.exp %251 : vector<8x32xf32>
    %cst_66 = arith.constant 1.000000e+00 : f32
    %253 = vector.broadcast %cst_66 : f32 to vector<8x32xf32>
    %254 = arith.addf %253, %252 : vector<8x32xf32>
    %255 = arith.divf %253, %254 : vector<8x32xf32>
    %256 = arith.mulf %247, %196 : vector<8x32xf32>
    %257 = arith.mulf %241, %249 : vector<8x32xf32>
    %258 = arith.addf %256, %257 : vector<8x32xf32>
    %259 = math.tanh %258 : vector<8x32xf32>
    %260 = arith.mulf %255, %259 : vector<8x32xf32>
    %c3_67 = arith.constant 3 : index
    %c0_68 = arith.constant 0 : index
    %c0_69 = arith.constant 0 : index
    %261 = vector.load %arg7[%c3_67, %c0_68, %c0_69] : memref<8x8x32xf32, #tpu.memory_space<vmem>>, vector<1x8x32xf32>
    %262 = vector.shape_cast %261 : vector<1x8x32xf32> to vector<8x32xf32>
    %263 = vector.shape_cast %260 : vector<8x32xf32> to vector<1x8x32xf32>
    tpu.vector_store %arg7[%c3_67, %c0_68, %c0_69], %263 {strides = array<i32>} : memref<8x8x32xf32, #tpu.memory_space<vmem>>, vector<1x8x32xf32>,
    %c4 = arith.constant 4 : index
    %c0_70 = arith.constant 0 : index
    %c0_71 = arith.constant 0 : index
    %264 = vector.load %arg1[%c4, %c0_70, %c0_71] : memref<8x8x128xf32, #tpu.memory_space<vmem>>, vector<1x8x128xf32>
    %265 = vector.shape_cast %264 : vector<1x8x128xf32> to vector<8x128xf32>
    %266 = arith.truncf %231 : vector<8x32xf32> to vector<8x32xbf16>
    %cst_72 = arith.constant dense<0.000000e+00> : vector<8x128xf32>
    %267 = tpu.matmul %266, %3, %cst_72 {dimension_numbers = #tpu.dot_dimension_numbers<[1], [0], [0], [1], [0, 0, 1, 1], [], []>} : vector<8x32xbf16>, vector<32x128xbf16>, vector<8x128xf32> -> vector<8x128xf32>
    %268 = arith.addf %265, %267 : vector<8x128xf32>
    %269 = vector.extract_strided_slice %268 {offsets = [0, 0], sizes = [8, 32], strides = [1, 1]} : vector<8x128xf32> to vector<8x32xf32>
    %270 = arith.negf %269 : vector<8x32xf32>
    %271 = math.exp %270 : vector<8x32xf32>
    %cst_73 = arith.constant 1.000000e+00 : f32
    %272 = vector.broadcast %cst_73 : f32 to vector<8x32xf32>
    %273 = arith.addf %272, %271 : vector<8x32xf32>
    %274 = arith.divf %272, %273 : vector<8x32xf32>
    %275 = vector.extract_strided_slice %268 {offsets = [0, 32], sizes = [8, 32], strides = [1, 1]} : vector<8x128xf32> to vector<8x32xf32>
    %276 = arith.negf %275 : vector<8x32xf32>
    %277 = math.exp %276 : vector<8x32xf32>
    %cst_74 = arith.constant 1.000000e+00 : f32
    %278 = vector.broadcast %cst_74 : f32 to vector<8x32xf32>
    %279 = arith.addf %278, %277 : vector<8x32xf32>
    %280 = arith.divf %278, %279 : vector<8x32xf32>
    %281 = vector.extract_strided_slice %268 {offsets = [0, 64], sizes = [8, 32], strides = [1, 1]} : vector<8x128xf32> to vector<8x32xf32>
    %282 = math.tanh %281 : vector<8x32xf32>
    %283 = vector.extract_strided_slice %268 {offsets = [0, 96], sizes = [8, 32], strides = [1, 1]} : vector<8x128xf32> to vector<8x32xf32>
    %284 = arith.negf %283 : vector<8x32xf32>
    %285 = math.exp %284 : vector<8x32xf32>
    %cst_75 = arith.constant 1.000000e+00 : f32
    %286 = vector.broadcast %cst_75 : f32 to vector<8x32xf32>
    %287 = arith.addf %286, %285 : vector<8x32xf32>
    %288 = arith.divf %286, %287 : vector<8x32xf32>
    %289 = arith.mulf %280, %229 : vector<8x32xf32>
    %290 = arith.mulf %274, %282 : vector<8x32xf32>
    %291 = arith.addf %289, %290 : vector<8x32xf32>
    %292 = math.tanh %291 : vector<8x32xf32>
    %293 = arith.mulf %288, %292 : vector<8x32xf32>
    %294 = tpu.concatenate %293, %260 in 1 : vector<8x32xf32>, vector<8x32xf32> -> vector<8x64xf32>
    %295 = arith.truncf %294 : vector<8x64xf32> to vector<8x64xbf16>
    %cst_76 = arith.constant dense<0.000000e+00> : vector<8x128xf32>
    %296 = tpu.matmul %295, %4, %cst_76 {dimension_numbers = #tpu.dot_dimension_numbers<[1], [0], [0], [1], [0, 0, 1, 1], [], []>} : vector<8x64xbf16>, vector<64x128xbf16>, vector<8x128xf32> -> vector<8x128xf32>
    %297 = arith.addf %296, %7 : vector<8x128xf32>
    %298 = vector.extract_strided_slice %297 {offsets = [0, 0], sizes = [8, 32], strides = [1, 1]} : vector<8x128xf32> to vector<8x32xf32>
    %299 = arith.negf %298 : vector<8x32xf32>
    %300 = math.exp %299 : vector<8x32xf32>
    %cst_77 = arith.constant 1.000000e+00 : f32
    %301 = vector.broadcast %cst_77 : f32 to vector<8x32xf32>
    %302 = arith.addf %301, %300 : vector<8x32xf32>
    %303 = arith.divf %301, %302 : vector<8x32xf32>
    %304 = vector.extract_strided_slice %297 {offsets = [0, 32], sizes = [8, 32], strides = [1, 1]} : vector<8x128xf32> to vector<8x32xf32>
    %305 = arith.negf %304 : vector<8x32xf32>
    %306 = math.exp %305 : vector<8x32xf32>
    %cst_78 = arith.constant 1.000000e+00 : f32
    %307 = vector.broadcast %cst_78 : f32 to vector<8x32xf32>
    %308 = arith.addf %307, %306 : vector<8x32xf32>
    %309 = arith.divf %307, %308 : vector<8x32xf32>
    %310 = vector.extract_strided_slice %297 {offsets = [0, 64], sizes = [8, 32], strides = [1, 1]} : vector<8x128xf32> to vector<8x32xf32>
    %311 = math.tanh %310 : vector<8x32xf32>
    %312 = vector.extract_strided_slice %297 {offsets = [0, 96], sizes = [8, 32], strides = [1, 1]} : vector<8x128xf32> to vector<8x32xf32>
    %313 = arith.negf %312 : vector<8x32xf32>
    %314 = math.exp %313 : vector<8x32xf32>
    %cst_79 = arith.constant 1.000000e+00 : f32
    %315 = vector.broadcast %cst_79 : f32 to vector<8x32xf32>
    %316 = arith.addf %315, %314 : vector<8x32xf32>
    %317 = arith.divf %315, %316 : vector<8x32xf32>
    %318 = arith.mulf %309, %258 : vector<8x32xf32>
    %319 = arith.mulf %303, %311 : vector<8x32xf32>
    %320 = arith.addf %318, %319 : vector<8x32xf32>
    %321 = math.tanh %320 : vector<8x32xf32>
    %322 = arith.mulf %317, %321 : vector<8x32xf32>
    %c4_80 = arith.constant 4 : index
    %c0_81 = arith.constant 0 : index
    %c0_82 = arith.constant 0 : index
    %323 = vector.load %arg7[%c4_80, %c0_81, %c0_82] : memref<8x8x32xf32, #tpu.memory_space<vmem>>, vector<1x8x32xf32>
    %324 = vector.shape_cast %323 : vector<1x8x32xf32> to vector<8x32xf32>
    %325 = vector.shape_cast %322 : vector<8x32xf32> to vector<1x8x32xf32>
    tpu.vector_store %arg7[%c4_80, %c0_81, %c0_82], %325 {strides = array<i32>} : memref<8x8x32xf32, #tpu.memory_space<vmem>>, vector<1x8x32xf32>,
    %c5 = arith.constant 5 : index
    %c0_83 = arith.constant 0 : index
    %c0_84 = arith.constant 0 : index
    %326 = vector.load %arg1[%c5, %c0_83, %c0_84] : memref<8x8x128xf32, #tpu.memory_space<vmem>>, vector<1x8x128xf32>
    %327 = vector.shape_cast %326 : vector<1x8x128xf32> to vector<8x128xf32>
    %328 = arith.truncf %293 : vector<8x32xf32> to vector<8x32xbf16>
    %cst_85 = arith.constant dense<0.000000e+00> : vector<8x128xf32>
    %329 = tpu.matmul %328, %3, %cst_85 {dimension_numbers = #tpu.dot_dimension_numbers<[1], [0], [0], [1], [0, 0, 1, 1], [], []>} : vector<8x32xbf16>, vector<32x128xbf16>, vector<8x128xf32> -> vector<8x128xf32>
    %330 = arith.addf %327, %329 : vector<8x128xf32>
    %331 = vector.extract_strided_slice %330 {offsets = [0, 0], sizes = [8, 32], strides = [1, 1]} : vector<8x128xf32> to vector<8x32xf32>
    %332 = arith.negf %331 : vector<8x32xf32>
    %333 = math.exp %332 : vector<8x32xf32>
    %cst_86 = arith.constant 1.000000e+00 : f32
    %334 = vector.broadcast %cst_86 : f32 to vector<8x32xf32>
    %335 = arith.addf %334, %333 : vector<8x32xf32>
    %336 = arith.divf %334, %335 : vector<8x32xf32>
    %337 = vector.extract_strided_slice %330 {offsets = [0, 32], sizes = [8, 32], strides = [1, 1]} : vector<8x128xf32> to vector<8x32xf32>
    %338 = arith.negf %337 : vector<8x32xf32>
    %339 = math.exp %338 : vector<8x32xf32>
    %cst_87 = arith.constant 1.000000e+00 : f32
    %340 = vector.broadcast %cst_87 : f32 to vector<8x32xf32>
    %341 = arith.addf %340, %339 : vector<8x32xf32>
    %342 = arith.divf %340, %341 : vector<8x32xf32>
    %343 = vector.extract_strided_slice %330 {offsets = [0, 64], sizes = [8, 32], strides = [1, 1]} : vector<8x128xf32> to vector<8x32xf32>
    %344 = math.tanh %343 : vector<8x32xf32>
    %345 = vector.extract_strided_slice %330 {offsets = [0, 96], sizes = [8, 32], strides = [1, 1]} : vector<8x128xf32> to vector<8x32xf32>
    %346 = arith.negf %345 : vector<8x32xf32>
    %347 = math.exp %346 : vector<8x32xf32>
    %cst_88 = arith.constant 1.000000e+00 : f32
    %348 = vector.broadcast %cst_88 : f32 to vector<8x32xf32>
    %349 = arith.addf %348, %347 : vector<8x32xf32>
    %350 = arith.divf %348, %349 : vector<8x32xf32>
    %351 = arith.mulf %342, %291 : vector<8x32xf32>
    %352 = arith.mulf %336, %344 : vector<8x32xf32>
    %353 = arith.addf %351, %352 : vector<8x32xf32>
    %354 = math.tanh %353 : vector<8x32xf32>
    %355 = arith.mulf %350, %354 : vector<8x32xf32>
    %356 = tpu.concatenate %355, %322 in 1 : vector<8x32xf32>, vector<8x32xf32> -> vector<8x64xf32>
    %357 = arith.truncf %356 : vector<8x64xf32> to vector<8x64xbf16>
    %cst_89 = arith.constant dense<0.000000e+00> : vector<8x128xf32>
    %358 = tpu.matmul %357, %4, %cst_89 {dimension_numbers = #tpu.dot_dimension_numbers<[1], [0], [0], [1], [0, 0, 1, 1], [], []>} : vector<8x64xbf16>, vector<64x128xbf16>, vector<8x128xf32> -> vector<8x128xf32>
    %359 = arith.addf %358, %7 : vector<8x128xf32>
    %360 = vector.extract_strided_slice %359 {offsets = [0, 0], sizes = [8, 32], strides = [1, 1]} : vector<8x128xf32> to vector<8x32xf32>
    %361 = arith.negf %360 : vector<8x32xf32>
    %362 = math.exp %361 : vector<8x32xf32>
    %cst_90 = arith.constant 1.000000e+00 : f32
    %363 = vector.broadcast %cst_90 : f32 to vector<8x32xf32>
    %364 = arith.addf %363, %362 : vector<8x32xf32>
    %365 = arith.divf %363, %364 : vector<8x32xf32>
    %366 = vector.extract_strided_slice %359 {offsets = [0, 32], sizes = [8, 32], strides = [1, 1]} : vector<8x128xf32> to vector<8x32xf32>
    %367 = arith.negf %366 : vector<8x32xf32>
    %368 = math.exp %367 : vector<8x32xf32>
    %cst_91 = arith.constant 1.000000e+00 : f32
    %369 = vector.broadcast %cst_91 : f32 to vector<8x32xf32>
    %370 = arith.addf %369, %368 : vector<8x32xf32>
    %371 = arith.divf %369, %370 : vector<8x32xf32>
    %372 = vector.extract_strided_slice %359 {offsets = [0, 64], sizes = [8, 32], strides = [1, 1]} : vector<8x128xf32> to vector<8x32xf32>
    %373 = math.tanh %372 : vector<8x32xf32>
    %374 = vector.extract_strided_slice %359 {offsets = [0, 96], sizes = [8, 32], strides = [1, 1]} : vector<8x128xf32> to vector<8x32xf32>
    %375 = arith.negf %374 : vector<8x32xf32>
    %376 = math.exp %375 : vector<8x32xf32>
    %cst_92 = arith.constant 1.000000e+00 : f32
    %377 = vector.broadcast %cst_92 : f32 to vector<8x32xf32>
    %378 = arith.addf %377, %376 : vector<8x32xf32>
    %379 = arith.divf %377, %378 : vector<8x32xf32>
    %380 = arith.mulf %371, %320 : vector<8x32xf32>
    %381 = arith.mulf %365, %373 : vector<8x32xf32>
    %382 = arith.addf %380, %381 : vector<8x32xf32>
    %383 = math.tanh %382 : vector<8x32xf32>
    %384 = arith.mulf %379, %383 : vector<8x32xf32>
    %c5_93 = arith.constant 5 : index
    %c0_94 = arith.constant 0 : index
    %c0_95 = arith.constant 0 : index
    %385 = vector.load %arg7[%c5_93, %c0_94, %c0_95] : memref<8x8x32xf32, #tpu.memory_space<vmem>>, vector<1x8x32xf32>
    %386 = vector.shape_cast %385 : vector<1x8x32xf32> to vector<8x32xf32>
    %387 = vector.shape_cast %384 : vector<8x32xf32> to vector<1x8x32xf32>
    tpu.vector_store %arg7[%c5_93, %c0_94, %c0_95], %387 {strides = array<i32>} : memref<8x8x32xf32, #tpu.memory_space<vmem>>, vector<1x8x32xf32>,
    %c6 = arith.constant 6 : index
    %c0_96 = arith.constant 0 : index
    %c0_97 = arith.constant 0 : index
    %388 = vector.load %arg1[%c6, %c0_96, %c0_97] : memref<8x8x128xf32, #tpu.memory_space<vmem>>, vector<1x8x128xf32>
    %389 = vector.shape_cast %388 : vector<1x8x128xf32> to vector<8x128xf32>
    %390 = arith.truncf %355 : vector<8x32xf32> to vector<8x32xbf16>
    %cst_98 = arith.constant dense<0.000000e+00> : vector<8x128xf32>
    %391 = tpu.matmul %390, %3, %cst_98 {dimension_numbers = #tpu.dot_dimension_numbers<[1], [0], [0], [1], [0, 0, 1, 1], [], []>} : vector<8x32xbf16>, vector<32x128xbf16>, vector<8x128xf32> -> vector<8x128xf32>
    %392 = arith.addf %389, %391 : vector<8x128xf32>
    %393 = vector.extract_strided_slice %392 {offsets = [0, 0], sizes = [8, 32], strides = [1, 1]} : vector<8x128xf32> to vector<8x32xf32>
    %394 = arith.negf %393 : vector<8x32xf32>
    %395 = math.exp %394 : vector<8x32xf32>
    %cst_99 = arith.constant 1.000000e+00 : f32
    %396 = vector.broadcast %cst_99 : f32 to vector<8x32xf32>
    %397 = arith.addf %396, %395 : vector<8x32xf32>
    %398 = arith.divf %396, %397 : vector<8x32xf32>
    %399 = vector.extract_strided_slice %392 {offsets = [0, 32], sizes = [8, 32], strides = [1, 1]} : vector<8x128xf32> to vector<8x32xf32>
    %400 = arith.negf %399 : vector<8x32xf32>
    %401 = math.exp %400 : vector<8x32xf32>
    %cst_100 = arith.constant 1.000000e+00 : f32
    %402 = vector.broadcast %cst_100 : f32 to vector<8x32xf32>
    %403 = arith.addf %402, %401 : vector<8x32xf32>
    %404 = arith.divf %402, %403 : vector<8x32xf32>
    %405 = vector.extract_strided_slice %392 {offsets = [0, 64], sizes = [8, 32], strides = [1, 1]} : vector<8x128xf32> to vector<8x32xf32>
    %406 = math.tanh %405 : vector<8x32xf32>
    %407 = vector.extract_strided_slice %392 {offsets = [0, 96], sizes = [8, 32], strides = [1, 1]} : vector<8x128xf32> to vector<8x32xf32>
    %408 = arith.negf %407 : vector<8x32xf32>
    %409 = math.exp %408 : vector<8x32xf32>
    %cst_101 = arith.constant 1.000000e+00 : f32
    %410 = vector.broadcast %cst_101 : f32 to vector<8x32xf32>
    %411 = arith.addf %410, %409 : vector<8x32xf32>
    %412 = arith.divf %410, %411 : vector<8x32xf32>
    %413 = arith.mulf %404, %353 : vector<8x32xf32>
    %414 = arith.mulf %398, %406 : vector<8x32xf32>
    %415 = arith.addf %413, %414 : vector<8x32xf32>
    %416 = math.tanh %415 : vector<8x32xf32>
    %417 = arith.mulf %412, %416 : vector<8x32xf32>
    %418 = tpu.concatenate %417, %384 in 1 : vector<8x32xf32>, vector<8x32xf32> -> vector<8x64xf32>
    %419 = arith.truncf %418 : vector<8x64xf32> to vector<8x64xbf16>
    %cst_102 = arith.constant dense<0.000000e+00> : vector<8x128xf32>
    %420 = tpu.matmul %419, %4, %cst_102 {dimension_numbers = #tpu.dot_dimension_numbers<[1], [0], [0], [1], [0, 0, 1, 1], [], []>} : vector<8x64xbf16>, vector<64x128xbf16>, vector<8x128xf32> -> vector<8x128xf32>
    %421 = arith.addf %420, %7 : vector<8x128xf32>
    %422 = vector.extract_strided_slice %421 {offsets = [0, 0], sizes = [8, 32], strides = [1, 1]} : vector<8x128xf32> to vector<8x32xf32>
    %423 = arith.negf %422 : vector<8x32xf32>
    %424 = math.exp %423 : vector<8x32xf32>
    %cst_103 = arith.constant 1.000000e+00 : f32
    %425 = vector.broadcast %cst_103 : f32 to vector<8x32xf32>
    %426 = arith.addf %425, %424 : vector<8x32xf32>
    %427 = arith.divf %425, %426 : vector<8x32xf32>
    %428 = vector.extract_strided_slice %421 {offsets = [0, 32], sizes = [8, 32], strides = [1, 1]} : vector<8x128xf32> to vector<8x32xf32>
    %429 = arith.negf %428 : vector<8x32xf32>
    %430 = math.exp %429 : vector<8x32xf32>
    %cst_104 = arith.constant 1.000000e+00 : f32
    %431 = vector.broadcast %cst_104 : f32 to vector<8x32xf32>
    %432 = arith.addf %431, %430 : vector<8x32xf32>
    %433 = arith.divf %431, %432 : vector<8x32xf32>
    %434 = vector.extract_strided_slice %421 {offsets = [0, 64], sizes = [8, 32], strides = [1, 1]} : vector<8x128xf32> to vector<8x32xf32>
    %435 = math.tanh %434 : vector<8x32xf32>
    %436 = vector.extract_strided_slice %421 {offsets = [0, 96], sizes = [8, 32], strides = [1, 1]} : vector<8x128xf32> to vector<8x32xf32>
    %437 = arith.negf %436 : vector<8x32xf32>
    %438 = math.exp %437 : vector<8x32xf32>
    %cst_105 = arith.constant 1.000000e+00 : f32
    %439 = vector.broadcast %cst_105 : f32 to vector<8x32xf32>
    %440 = arith.addf %439, %438 : vector<8x32xf32>
    %441 = arith.divf %439, %440 : vector<8x32xf32>
    %442 = arith.mulf %433, %382 : vector<8x32xf32>
    %443 = arith.mulf %427, %435 : vector<8x32xf32>
    %444 = arith.addf %442, %443 : vector<8x32xf32>
    %445 = math.tanh %444 : vector<8x32xf32>
    %446 = arith.mulf %441, %445 : vector<8x32xf32>
    %c6_106 = arith.constant 6 : index
    %c0_107 = arith.constant 0 : index
    %c0_108 = arith.constant 0 : index
    %447 = vector.load %arg7[%c6_106, %c0_107, %c0_108] : memref<8x8x32xf32, #tpu.memory_space<vmem>>, vector<1x8x32xf32>
    %448 = vector.shape_cast %447 : vector<1x8x32xf32> to vector<8x32xf32>
    %449 = vector.shape_cast %446 : vector<8x32xf32> to vector<1x8x32xf32>
    tpu.vector_store %arg7[%c6_106, %c0_107, %c0_108], %449 {strides = array<i32>} : memref<8x8x32xf32, #tpu.memory_space<vmem>>, vector<1x8x32xf32>,
    %c7 = arith.constant 7 : index
    %c0_109 = arith.constant 0 : index
    %c0_110 = arith.constant 0 : index
    %450 = vector.load %arg1[%c7, %c0_109, %c0_110] : memref<8x8x128xf32, #tpu.memory_space<vmem>>, vector<1x8x128xf32>
    %451 = vector.shape_cast %450 : vector<1x8x128xf32> to vector<8x128xf32>
    %452 = arith.truncf %417 : vector<8x32xf32> to vector<8x32xbf16>
    %cst_111 = arith.constant dense<0.000000e+00> : vector<8x128xf32>
    %453 = tpu.matmul %452, %3, %cst_111 {dimension_numbers = #tpu.dot_dimension_numbers<[1], [0], [0], [1], [0, 0, 1, 1], [], []>} : vector<8x32xbf16>, vector<32x128xbf16>, vector<8x128xf32> -> vector<8x128xf32>
    %454 = arith.addf %451, %453 : vector<8x128xf32>
    %455 = vector.extract_strided_slice %454 {offsets = [0, 0], sizes = [8, 32], strides = [1, 1]} : vector<8x128xf32> to vector<8x32xf32>
    %456 = arith.negf %455 : vector<8x32xf32>
    %457 = math.exp %456 : vector<8x32xf32>
    %cst_112 = arith.constant 1.000000e+00 : f32
    %458 = vector.broadcast %cst_112 : f32 to vector<8x32xf32>
    %459 = arith.addf %458, %457 : vector<8x32xf32>
    %460 = arith.divf %458, %459 : vector<8x32xf32>
    %461 = vector.extract_strided_slice %454 {offsets = [0, 32], sizes = [8, 32], strides = [1, 1]} : vector<8x128xf32> to vector<8x32xf32>
    %462 = arith.negf %461 : vector<8x32xf32>
    %463 = math.exp %462 : vector<8x32xf32>
    %cst_113 = arith.constant 1.000000e+00 : f32
    %464 = vector.broadcast %cst_113 : f32 to vector<8x32xf32>
    %465 = arith.addf %464, %463 : vector<8x32xf32>
    %466 = arith.divf %464, %465 : vector<8x32xf32>
    %467 = vector.extract_strided_slice %454 {offsets = [0, 64], sizes = [8, 32], strides = [1, 1]} : vector<8x128xf32> to vector<8x32xf32>
    %468 = math.tanh %467 : vector<8x32xf32>
    %469 = vector.extract_strided_slice %454 {offsets = [0, 96], sizes = [8, 32], strides = [1, 1]} : vector<8x128xf32> to vector<8x32xf32>
    %470 = arith.negf %469 : vector<8x32xf32>
    %471 = math.exp %470 : vector<8x32xf32>
    %cst_114 = arith.constant 1.000000e+00 : f32
    %472 = vector.broadcast %cst_114 : f32 to vector<8x32xf32>
    %473 = arith.addf %472, %471 : vector<8x32xf32>
    %474 = arith.divf %472, %473 : vector<8x32xf32>
    %475 = arith.mulf %466, %415 : vector<8x32xf32>
    %476 = arith.mulf %460, %468 : vector<8x32xf32>
    %477 = arith.addf %475, %476 : vector<8x32xf32>
    %478 = math.tanh %477 : vector<8x32xf32>
    %479 = arith.mulf %474, %478 : vector<8x32xf32>
    %480 = tpu.concatenate %479, %446 in 1 : vector<8x32xf32>, vector<8x32xf32> -> vector<8x64xf32>
    %481 = arith.truncf %480 : vector<8x64xf32> to vector<8x64xbf16>
    %cst_115 = arith.constant dense<0.000000e+00> : vector<8x128xf32>
    %482 = tpu.matmul %481, %4, %cst_115 {dimension_numbers = #tpu.dot_dimension_numbers<[1], [0], [0], [1], [0, 0, 1, 1], [], []>} : vector<8x64xbf16>, vector<64x128xbf16>, vector<8x128xf32> -> vector<8x128xf32>
    %483 = arith.addf %482, %7 : vector<8x128xf32>
    %484 = vector.extract_strided_slice %483 {offsets = [0, 0], sizes = [8, 32], strides = [1, 1]} : vector<8x128xf32> to vector<8x32xf32>
    %485 = arith.negf %484 : vector<8x32xf32>
    %486 = math.exp %485 : vector<8x32xf32>
    %cst_116 = arith.constant 1.000000e+00 : f32
    %487 = vector.broadcast %cst_116 : f32 to vector<8x32xf32>
    %488 = arith.addf %487, %486 : vector<8x32xf32>
    %489 = arith.divf %487, %488 : vector<8x32xf32>
    %490 = vector.extract_strided_slice %483 {offsets = [0, 32], sizes = [8, 32], strides = [1, 1]} : vector<8x128xf32> to vector<8x32xf32>
    %491 = arith.negf %490 : vector<8x32xf32>
    %492 = math.exp %491 : vector<8x32xf32>
    %cst_117 = arith.constant 1.000000e+00 : f32
    %493 = vector.broadcast %cst_117 : f32 to vector<8x32xf32>
    %494 = arith.addf %493, %492 : vector<8x32xf32>
    %495 = arith.divf %493, %494 : vector<8x32xf32>
    %496 = vector.extract_strided_slice %483 {offsets = [0, 64], sizes = [8, 32], strides = [1, 1]} : vector<8x128xf32> to vector<8x32xf32>
    %497 = math.tanh %496 : vector<8x32xf32>
    %498 = vector.extract_strided_slice %483 {offsets = [0, 96], sizes = [8, 32], strides = [1, 1]} : vector<8x128xf32> to vector<8x32xf32>
    %499 = arith.negf %498 : vector<8x32xf32>
    %500 = math.exp %499 : vector<8x32xf32>
    %cst_118 = arith.constant 1.000000e+00 : f32
    %501 = vector.broadcast %cst_118 : f32 to vector<8x32xf32>
    %502 = arith.addf %501, %500 : vector<8x32xf32>
    %503 = arith.divf %501, %502 : vector<8x32xf32>
    %504 = arith.mulf %495, %444 : vector<8x32xf32>
    %505 = arith.mulf %489, %497 : vector<8x32xf32>
    %506 = arith.addf %504, %505 : vector<8x32xf32>
    %507 = math.tanh %506 : vector<8x32xf32>
    %508 = arith.mulf %503, %507 : vector<8x32xf32>
    %c7_119 = arith.constant 7 : index
    %c0_120 = arith.constant 0 : index
    %c0_121 = arith.constant 0 : index
    %509 = vector.load %arg7[%c7_119, %c0_120, %c0_121] : memref<8x8x32xf32, #tpu.memory_space<vmem>>, vector<1x8x32xf32>
    %510 = vector.shape_cast %509 : vector<1x8x32xf32> to vector<8x32xf32>
    %511 = vector.shape_cast %508 : vector<8x32xf32> to vector<1x8x32xf32>
    tpu.vector_store %arg7[%c7_119, %c0_120, %c0_121], %511 {strides = array<i32>} : memref<8x8x32xf32, #tpu.memory_space<vmem>>, vector<1x8x32xf32>,
    %c0_122 = arith.constant 0 : index
    %c0_123 = arith.constant 0 : index
    %c0_124 = arith.constant 0 : index
    %512 = vector.load %arg10[%c0_122, %c0_123, %c0_124] : memref<2x8x32xf32, #tpu.memory_space<vmem>>, vector<1x8x32xf32>
    %513 = vector.shape_cast %512 : vector<1x8x32xf32> to vector<8x32xf32>
    %514 = vector.shape_cast %479 : vector<8x32xf32> to vector<1x8x32xf32>
    tpu.vector_store %arg10[%c0_122, %c0_123, %c0_124], %514 {strides = array<i32>} : memref<2x8x32xf32, #tpu.memory_space<vmem>>, vector<1x8x32xf32>,
    %c0_125 = arith.constant 0 : index
    %c0_126 = arith.constant 0 : index
    %c0_127 = arith.constant 0 : index
    %515 = vector.load %arg11[%c0_125, %c0_126, %c0_127] : memref<2x8x32xf32, #tpu.memory_space<vmem>>, vector<1x8x32xf32>
    %516 = vector.shape_cast %515 : vector<1x8x32xf32> to vector<8x32xf32>
    %517 = vector.shape_cast %477 : vector<8x32xf32> to vector<1x8x32xf32>
    tpu.vector_store %arg11[%c0_125, %c0_126, %c0_127], %517 {strides = array<i32>} : memref<2x8x32xf32, #tpu.memory_space<vmem>>, vector<1x8x32xf32>,
    %c1_128 = arith.constant 1 : index
    %c0_129 = arith.constant 0 : index
    %c0_130 = arith.constant 0 : index
    %518 = vector.load %arg10[%c1_128, %c0_129, %c0_130] : memref<2x8x32xf32, #tpu.memory_space<vmem>>, vector<1x8x32xf32>
    %519 = vector.shape_cast %518 : vector<1x8x32xf32> to vector<8x32xf32>
    %520 = vector.shape_cast %508 : vector<8x32xf32> to vector<1x8x32xf32>
    tpu.vector_store %arg10[%c1_128, %c0_129, %c0_130], %520 {strides = array<i32>} : memref<2x8x32xf32, #tpu.memory_space<vmem>>, vector<1x8x32xf32>,
    %c1_131 = arith.constant 1 : index
    %c0_132 = arith.constant 0 : index
    %c0_133 = arith.constant 0 : index
    %521 = vector.load %arg11[%c1_131, %c0_132, %c0_133] : memref<2x8x32xf32, #tpu.memory_space<vmem>>, vector<1x8x32xf32>
    %522 = vector.shape_cast %521 : vector<1x8x32xf32> to vector<8x32xf32>
    %523 = vector.shape_cast %506 : vector<8x32xf32> to vector<1x8x32xf32>
    tpu.vector_store %arg11[%c1_131, %c0_132, %c0_133], %523 {strides = array<i32>} : memref<2x8x32xf32, #tpu.memory_space<vmem>>, vector<1x8x32xf32>,
    %c0_134 = arith.constant 0 : index
    %c0_135 = arith.constant 0 : index
    %c0_136 = arith.constant 0 : index
    %524 = vector.load %arg8[%c0_134, %c0_135, %c0_136] : memref<2x8x32xf32, #tpu.memory_space<vmem>>, vector<1x8x32xf32>
    %525 = vector.shape_cast %524 : vector<1x8x32xf32> to vector<8x32xf32>
    %526 = vector.shape_cast %479 : vector<8x32xf32> to vector<1x8x32xf32>
    tpu.vector_store %arg8[%c0_134, %c0_135, %c0_136], %526 {strides = array<i32>} : memref<2x8x32xf32, #tpu.memory_space<vmem>>, vector<1x8x32xf32>,
    %c0_137 = arith.constant 0 : index
    %c0_138 = arith.constant 0 : index
    %c0_139 = arith.constant 0 : index
    %527 = vector.load %arg9[%c0_137, %c0_138, %c0_139] : memref<2x8x32xf32, #tpu.memory_space<vmem>>, vector<1x8x32xf32>
    %528 = vector.shape_cast %527 : vector<1x8x32xf32> to vector<8x32xf32>
    %529 = vector.shape_cast %477 : vector<8x32xf32> to vector<1x8x32xf32>
    tpu.vector_store %arg9[%c0_137, %c0_138, %c0_139], %529 {strides = array<i32>} : memref<2x8x32xf32, #tpu.memory_space<vmem>>, vector<1x8x32xf32>,
    %c1_140 = arith.constant 1 : index
    %c0_141 = arith.constant 0 : index
    %c0_142 = arith.constant 0 : index
    %530 = vector.load %arg8[%c1_140, %c0_141, %c0_142] : memref<2x8x32xf32, #tpu.memory_space<vmem>>, vector<1x8x32xf32>
    %531 = vector.shape_cast %530 : vector<1x8x32xf32> to vector<8x32xf32>
    %532 = vector.shape_cast %508 : vector<8x32xf32> to vector<1x8x32xf32>
    tpu.vector_store %arg8[%c1_140, %c0_141, %c0_142], %532 {strides = array<i32>} : memref<2x8x32xf32, #tpu.memory_space<vmem>>, vector<1x8x32xf32>,
    %c1_143 = arith.constant 1 : index
    %c0_144 = arith.constant 0 : index
    %c0_145 = arith.constant 0 : index
    %533 = vector.load %arg9[%c1_143, %c0_144, %c0_145] : memref<2x8x32xf32, #tpu.memory_space<vmem>>, vector<1x8x32xf32>
    %534 = vector.shape_cast %533 : vector<1x8x32xf32> to vector<8x32xf32>
    %535 = vector.shape_cast %506 : vector<8x32xf32> to vector<1x8x32xf32>
    tpu.vector_store %arg9[%c1_143, %c0_144, %c0_145], %535 {strides = array<i32>} : memref<2x8x32xf32, #tpu.memory_space<vmem>>, vector<1x8x32xf32>,
    return
  }
  func.func @transform_0(%arg0: i32) -> (i32, i32, i32) {
    %c0_i32 = arith.constant 0 : i32
    %c0_i32_0 = arith.constant 0 : i32
    %c0_i32_1 = arith.constant 0 : i32
    return %arg0, %c0_i32, %c0_i32_0 : i32, i32, i32
  }
  func.func @transform_1(%arg0: i32) -> (i32, i32, i32) {
    %c0_i32 = arith.constant 0 : i32
    %c0_i32_0 = arith.constant 0 : i32
    %c0_i32_1 = arith.constant 0 : i32
    %c0_i32_2 = arith.constant 0 : i32
    return %c0_i32, %c0_i32_0, %c0_i32_1 : i32, i32, i32
  }
  func.func @transform_2(%arg0: i32) -> (i32, i32, i32) {
    %c0_i32 = arith.constant 0 : i32
    %c0_i32_0 = arith.constant 0 : i32
    %c0_i32_1 = arith.constant 0 : i32
    %c0_i32_2 = arith.constant 0 : i32
    return %c0_i32, %c0_i32_0, %c0_i32_1 : i32, i32, i32
  }
  func.func @transform_3(%arg0: i32) -> (i32, i32) {
    %c0_i32 = arith.constant 0 : i32
    %c0_i32_0 = arith.constant 0 : i32
    %c0_i32_1 = arith.constant 0 : i32
    return %c0_i32, %c0_i32_0 : i32, i32
  }
  func.func @transform_4(%arg0: i32) -> (i32, i32) {
    %c0_i32 = arith.constant 0 : i32
    %c0_i32_0 = arith.constant 0 : i32
    %c0_i32_1 = arith.constant 0 : i32
    return %c0_i32, %c0_i32_0 : i32, i32
  }
  func.func @transform_5(%arg0: i32) -> (i32, i32) {
    %c0_i32 = arith.constant 0 : i32
    %c0_i32_0 = arith.constant 0 : i32
    %c0_i32_1 = arith.constant 0 : i32
    return %c0_i32, %c0_i32_0 : i32, i32
  }
  func.func @transform_6(%arg0: i32) -> (i32, i32, i32) {
    %c0_i32 = arith.constant 0 : i32
    %c0_i32_0 = arith.constant 0 : i32
    %c0_i32_1 = arith.constant 0 : i32
    return %arg0, %c0_i32, %c0_i32_0 : i32, i32, i32
  }
  func.func @transform_7(%arg0: i32) -> (i32, i32, i32) {
    %c0_i32 = arith.constant 0 : i32
    %c0_i32_0 = arith.constant 0 : i32
    %c0_i32_1 = arith.constant 0 : i32
    %c0_i32_2 = arith.constant 0 : i32
    return %c0_i32, %c0_i32_0, %c0_i32_1 : i32, i32, i32
  }
  func.func @transform_8(%arg0: i32) -> (i32, i32, i32) {
    %c0_i32 = arith.constant 0 : i32
    %c0_i32_0 = arith.constant 0 : i32
    %c0_i32_1 = arith.constant 0 : i32
    %c0_i32_2 = arith.constant 0 : i32
    return %c0_i32, %c0_i32_0, %c0_i32_1 : i32, i32, i32
  }
}

</mosaic_0001>

<llo_original>
// kernel: rnn_decoder_forward.1
$region0: #{rnn_decoder_forward.1}
  #allocation0 [shape = 'u32[]', space=smem, size = 0x4, offset = 0x4, fixed_abs, tag = 'smem constant byte address 0x4 - core index']
  #allocation1 [shape = 'u32[144,128]{1,0:T(1,128)}', space=vmem, size = 0x12000, scoped, tag = 'internal scratch']
  #allocation2 [shape = 'f32[2,8,32]{2,1,0:T(8,128)}', space=vmem, size = 0x2000, scoped, tag = 'scratch operand']
  #allocation3 [shape = 'f32[2,8,32]{2,1,0:T(8,128)}', space=vmem, size = 0x2000, scoped, tag = 'scratch operand']
  %s0 = inlined_call_operand.vmem [shape: f32[8,8,128], index: 0, kind: input, shape index: {}]
  %s1 = inlined_call_operand.vmem [shape: f32[2,8,32], index: 1, kind: input, shape index: {}]
  %s2 = inlined_call_operand.vmem [shape: f32[2,8,32], index: 2, kind: input, shape index: {}]
  %s3 = inlined_call_operand.vmem [shape: bf16[32,128], index: 3, kind: input, shape index: {}]
  %s4 = inlined_call_operand.vmem [shape: bf16[64,128], index: 4, kind: input, shape index: {}]
  %s5 = inlined_call_operand.vmem [shape: f32[1,128], index: 5, kind: input, shape index: {}]
  %s6 = inlined_call_operand.vmem [shape: f32[8,8,32], index: 6, kind: output, shape index: {0}]
  %s7 = inlined_call_operand.vmem [shape: f32[2,8,32], index: 7, kind: output, shape index: {1}]
  %s8 = inlined_call_operand.vmem [shape: f32[2,8,32], index: 8, kind: output, shape index: {2}]
  %9 = xla_tuple %s6, %s7, %s8
  %s10 = sld [smem:[#allocation0]]
  $region54: #{rnn_decoder_forward.1} parent=0
    _
  %s12 = ssub.s32 1, %s10
  %s13 = scalar_select 0, %s12, %s10
  // Predicated region
  $region2: #{rnn_decoder_forward.1} parent=0 // pred_check
    _
  $region3: #{rnn_decoder_forward.1} parent=0 // pred_check_branch
    %15 = sbr.rel (0) target = $region5
  $region4: #{rnn_decoder_forward.1} parent=0 // pred_region
    _
  $region5: #{rnn_decoder_forward.1} parent=0 // pred_fallthru
    _
  // Predicated region
  $region6: #{rnn_decoder_forward.1} parent=0 // pred_check
    _
  $region7: #{rnn_decoder_forward.1} parent=0 // pred_check_branch
    %17 = sbr.rel (0) target = $region9
  $region8: #{rnn_decoder_forward.1} parent=0 // pred_region
    _
  $region9: #{rnn_decoder_forward.1} parent=0 // pred_fallthru
    _
  // Predicated region
  $region10: #{rnn_decoder_forward.1} parent=0 // pred_check
    _
  $region11: #{rnn_decoder_forward.1} parent=0 // pred_check_branch
    %19 = sbr.rel (0) target = $region13
  $region12: #{rnn_decoder_forward.1} parent=0 // pred_region
    _
  $region13: #{rnn_decoder_forward.1} parent=0 // pred_fallthru
    _
  // Predicated region
  $region14: #{rnn_decoder_forward.1} parent=0 // pred_check
    _
  $region15: #{rnn_decoder_forward.1} parent=0 // pred_check_branch
    %21 = sbr.rel (0) target = $region17
  $region16: #{rnn_decoder_forward.1} parent=0 // pred_region
    _
  $region17: #{rnn_decoder_forward.1} parent=0 // pred_fallthru
    _
  // Predicated region
  $region18: #{rnn_decoder_forward.1} parent=0 // pred_check
    _
  $region19: #{rnn_decoder_forward.1} parent=0 // pred_check_branch
    %23 = sbr.rel (0) target = $region21
  $region20: #{rnn_decoder_forward.1} parent=0 // pred_region
    _
  $region21: #{rnn_decoder_forward.1} parent=0 // pred_fallthru
    _
  // Predicated region
  $region22: #{rnn_decoder_forward.1} parent=0 // pred_check
    _
  $region23: #{rnn_decoder_forward.1} parent=0 // pred_check_branch
    %25 = sbr.rel (0) target = $region25
  $region24: #{rnn_decoder_forward.1} parent=0 // pred_region
    _
  $region25: #{rnn_decoder_forward.1} parent=0 // pred_fallthru
    _
  %p27 = scmp.eq.s32.totalorder 0, 0
  // Predicated region
  $region26: #{rnn_decoder_forward.1} parent=0 // pred_check
    %p28 = pneg %p27
  $region27: #{rnn_decoder_forward.1} parent=0 // pred_check_branch
    %30 = sbr.rel (%p28) target = $region29
  $region28: #{rnn_decoder_forward.1} parent=0 // pred_region
    %v31 = vld [vmem:[%s1] sm:$0xff]
    %v32 = vld [vmem:[%s1 + $0x8] sm:$0xff]
    %vm33 = vcmask 261120
    %34 = vst.msk [vmem:[#allocation2] sm:$0xff] %vm33, %v31
    %35 = vst.msk [vmem:[#allocation2 + $0x8] sm:$0xff] %vm33, %v32
    %v36 = vld [vmem:[%s2] sm:$0xff]
    %v37 = vld [vmem:[%s2 + $0x8] sm:$0xff]
    %38 = vst.msk [vmem:[#allocation3] sm:$0xff] %vm33, %v36
    %39 = vst.msk [vmem:[#allocation3 + $0x8] sm:$0xff] %vm33, %v37
  $region29: #{rnn_decoder_forward.1} parent=0 // pred_fallthru
    _
  %v40 = vld [vmem:[%s3] sm:$0xf]
  %v41 = vld [vmem:[%s3 + $0x4] sm:$0xf]
  %v42 = vld [vmem:[%s3 + $0x8] sm:$0xf]
  %v43 = vld [vmem:[%s3 + $0xc] sm:$0xf]
  %v44 = vld [vmem:[%s4] sm:$0xf]
  %v45 = vld [vmem:[%s4 + $0x4] sm:$0xf]
  %v46 = vld [vmem:[%s4 + $0x8] sm:$0xf]
  %v47 = vld [vmem:[%s4 + $0xc] sm:$0xf]
  %v48 = vld [vmem:[%s4 + $0x10] sm:$0xf]
  %v49 = vld [vmem:[%s4 + $0x14] sm:$0xf]
  %v50 = vld [vmem:[%s4 + $0x18] sm:$0xf]
  %v51 = vld [vmem:[%s4 + $0x1c] sm:$0xf]
  %v52 = vld [vmem:[%s5] sm:$0x1]
  %v54 = vlaneseq
  %v55 = vshrl.u32 %v54, 7
  %v56 = vsub.s32 0, %v55
  %v57 = vrot.slane %v52, %v56
  %v59 = vld [vmem:[#allocation2] sm:$0xff]
  %v60 = vld [vmem:[#allocation3] sm:$0xff]
  %s61 = scalar_lea.vmem [#allocation2], 8
  %v62 = vld [vmem:[%s61] sm:$0xff]
  %s63 = scalar_lea.vmem [#allocation3], 8
  %v64 = vld [vmem:[%s63] sm:$0xff]
  %v65 = vld [vmem:[%s0] sm:$0xff]
  %v66 = vpack.c.bf16 %v59, %v59
  %v71 = vunpack.c.l.b16 %v40
  %v72 = vunpack.c.l.b16 %v41
  %v73 = vunpack.c.l.b16 %v42
  %v74 = vunpack.c.l.b16 %v43
  %v75 = vpack.c.b16 %v72, %v71
  %v76 = vpack.c.b16 %v74, %v73
  %vm79 = vcmask 261120
  %v81 = vsel %vm79, %v66, 0
  %83 = vmatprep.subr.bf16.mxu0 0
  %84 = vmatpush1.bf16.msra.mxu0 0
  %85 = vmatprep.subr.bf16.mxu0 0
  %86 = vmatpush1.bf16.msra.mxu0 0
  %87 = vmatprep.subr.bf16.mxu0 0
  %88 = vmatpush1.bf16.msra.mxu0 0
  %89 = vmatprep.subr.bf16.mxu0 0
  %90 = vmatpush1.bf16.msra.mxu0 0
  %91 = vmatprep.subr.bf16.mxu0 0
  %92 = vmatpush1.bf16.msra.mxu0 0
  %93 = vmatprep.subr.bf16.mxu0 0
  %94 = vmatpush1.bf16.msra.mxu0 0
  %95 = vmatprep.subr.bf16.mxu0 0
  %96 = vmatpush1.bf16.msra.mxu0 %v76
  %97 = vmatprep.subr.bf16.mxu0 0
  %98 = vmatpush1.bf16.msra.mxu0 %v75
  %99 = vmatprep.subr.bf16.mxu0 0
  %100 = vmatpush2.bf16.msra.mxu0 0
  %101 = vmatprep.subr.bf16.mxu0 0
  %102 = vmatpush2.bf16.msra.mxu0 0
  %103 = vmatprep.subr.bf16.mxu0 0
  %104 = vmatpush2.bf16.msra.mxu0 0
  %105 = vmatprep.subr.bf16.mxu0 0
  %106 = vmatpush2.bf16.msra.mxu0 0
  %107 = vmatprep.subr.bf16.mxu0 0
  %108 = vmatpush2.bf16.msra.mxu0 0
  %109 = vmatprep.subr.bf16.mxu0 0
  %110 = vmatpush2.bf16.msra.mxu0 0
  %111 = vmatprep.subr.bf16.mxu0 0
  %112 = vmatpush2.bf16.msra.mxu0 0
  %113 = vmatprep.subr.bf16.mxu0 0
  %114 = vmatpush2.bf16.msra.mxu0 0
  %115 = vmatprep.mubr.bf16.mxu0 0
  %116 = vmatmul.mubr.bf16.gmra.mxu0 %v81
  %v117 = vpop.f32.mrf.mxu0
  %v118 = vadd.f32 0.0, %v117
  %v119 = vpop.f32.mrf.mxu0
  %v120 = vpop.f32.mrf.mxu0
  %v121 = vpop.f32.mrf.mxu0
  %122 = vdwg.mxu0
  %v123 = vadd.f32 %v65, %v118
  %v124 = vxor.u32 %v123, 2147483648
  %v125 = vmul.f32 %v124, 1.442695
  %v126 = vpow.pop %v125
  %v127 = vadd.f32 %v126, 1.0
  %v128 = vrcp.pop %v127
  %v129 = vmul.f32 1.0, %v128
  %v130 = vtanh.pop %v123
  %132 = vrot.lane.b32.xlu0 %v60, 32
  %v133 = vpop.permute.xlu0 %132
  %v135 = vmul.f32 %v129, %v133
  %137 = vrot.lane.b32.xlu0 %v130, 64
  %v138 = vpop.permute.xlu0 %137
  %v140 = vmul.f32 %v129, %v138
  %142 = vrot.lane.b32.xlu0 %v140, 32
  %v143 = vpop.permute.xlu0 %142
  %v145 = vadd.f32 %v135, %v143
  %v146 = vtanh.pop %v145
  %148 = vrot.lane.b32.xlu0 %v146, 64
  %v149 = vpop.permute.xlu0 %148
  %v151 = vmul.f32 %v129, %v149
  %153 = vrot.lane.b32.xlu0 %v151, 32
  %v154 = vpop.permute.xlu0 %153
  %157 = vrot.lane.b32.xlu0 %v62, 32
  %v158 = vpop.permute.xlu0 %157
  %v160 = vsel %vm79, %v154, %v158
  %v161 = vpack.c.bf16 %v160, %v160
  %v170 = vunpack.c.l.b16 %v44
  %v171 = vunpack.c.l.b16 %v45
  %v172 = vunpack.c.l.b16 %v46
  %v173 = vunpack.c.l.b16 %v47
  %v174 = vunpack.c.l.b16 %v48
  %v175 = vunpack.c.l.b16 %v49
  %v176 = vunpack.c.l.b16 %v50
  %v177 = vunpack.c.l.b16 %v51
  %v178 = vpack.c.b16 %v171, %v170
  %v179 = vpack.c.b16 %v173, %v172
  %v180 = vpack.c.b16 %v175, %v174
  %v181 = vpack.c.b16 %v177, %v176
  %vm186 = vcmask 523264
  %v188 = vsel %vm186, %v161, 0
  %190 = vmatprep.subr.bf16.mxu0 0
  %191 = vmatpush1.bf16.msra.mxu0 0
  %192 = vmatprep.subr.bf16.mxu0 0
  %193 = vmatpush1.bf16.msra.mxu0 0
  %194 = vmatprep.subr.bf16.mxu0 0
  %195 = vmatpush1.bf16.msra.mxu0 0
  %196 = vmatprep.subr.bf16.mxu0 0
  %197 = vmatpush1.bf16.msra.mxu0 0
  %198 = vmatprep.subr.bf16.mxu0 0
  %199 = vmatpush1.bf16.msra.mxu0 %v181
  %200 = vmatprep.subr.bf16.mxu0 0
  %201 = vmatpush1.bf16.msra.mxu0 %v180
  %202 = vmatprep.subr.bf16.mxu0 0
  %203 = vmatpush1.bf16.msra.mxu0 %v179
  %204 = vmatprep.subr.bf16.mxu0 0
  %205 = vmatpush1.bf16.msra.mxu0 %v178
  %206 = vmatprep.subr.bf16.mxu0 0
  %207 = vmatpush2.bf16.msra.mxu0 0
  %208 = vmatprep.subr.bf16.mxu0 0
  %209 = vmatpush2.bf16.msra.mxu0 0
  %210 = vmatprep.subr.bf16.mxu0 0
  %211 = vmatpush2.bf16.msra.mxu0 0
  %212 = vmatprep.subr.bf16.mxu0 0
  %213 = vmatpush2.bf16.msra.mxu0 0
  %214 = vmatprep.subr.bf16.mxu0 0
  %215 = vmatpush2.bf16.msra.mxu0 0
  %216 = vmatprep.subr.bf16.mxu0 0
  %217 = vmatpush2.bf16.msra.mxu0 0
  %218 = vmatprep.subr.bf16.mxu0 0
  %219 = vmatpush2.bf16.msra.mxu0 0
  %220 = vmatprep.subr.bf16.mxu0 0
  %221 = vmatpush2.bf16.msra.mxu0 0
  %222 = vmatprep.mubr.bf16.mxu0 0
  %223 = vmatmul.mubr.bf16.gmra.mxu0 %v188
  %v224 = vpop.f32.mrf.mxu0
  %v225 = vadd.f32 %v57, %v224
  %v226 = vpop.f32.mrf.mxu0
  %v227 = vpop.f32.mrf.mxu0
  %v228 = vpop.f32.mrf.mxu0
  %229 = vdwg.mxu0
  %v230 = vxor.u32 %v225, 2147483648
  %v231 = vmul.f32 %v230, 1.442695
  %v232 = vpow.pop %v231
  %v233 = vadd.f32 %v232, 1.0
  %v234 = vrcp.pop %v233
  %v235 = vmul.f32 1.0, %v234
  %v236 = vtanh.pop %v225
  %238 = vrot.lane.b32.xlu0 %v64, 32
  %v239 = vpop.permute.xlu0 %238
  %v241 = vmul.f32 %v235, %v239
  %243 = vrot.lane.b32.xlu0 %v236, 64
  %v244 = vpop.permute.xlu0 %243
  %v246 = vmul.f32 %v235, %v244
  %248 = vrot.lane.b32.xlu0 %v246, 32
  %v249 = vpop.permute.xlu0 %248
  %v251 = vadd.f32 %v241, %v249
  %v252 = vtanh.pop %v251
  %254 = vrot.lane.b32.xlu0 %v252, 64
  %v255 = vpop.permute.xlu0 %254
  %v257 = vmul.f32 %v235, %v255
  %259 = vrot.lane.b32.xlu0 %v257, 32
  %v260 = vpop.permute.xlu0 %259
  %262 = vst.msk [vmem:[%s6] sm:$0xff] %vm79, %v260
  %s263 = scalar_lea.vmem %s0, 8
  %v264 = vld [vmem:[%s263] sm:$0xff]
  %v265 = vpack.c.bf16 %v151, %v151
  %267 = vrot.lane.b32.xlu0 %v265, 32
  %v268 = vpop.permute.xlu0 %267
  %v270 = vsel %vm79, %v268, 0
  %272 = vmatprep.subr.bf16.mxu0 0
  %273 = vmatpush1.bf16.msra.mxu0 0
  %274 = vmatprep.subr.bf16.mxu0 0
  %275 = vmatpush1.bf16.msra.mxu0 0
  %276 = vmatprep.subr.bf16.mxu0 0
  %277 = vmatpush1.bf16.msra.mxu0 0
  %278 = vmatprep.subr.bf16.mxu0 0
  %279 = vmatpush1.bf16.msra.mxu0 0
  %280 = vmatprep.subr.bf16.mxu0 0
  %281 = vmatpush1.bf16.msra.mxu0 0
  %282 = vmatprep.subr.bf16.mxu0 0
  %283 = vmatpush1.bf16.msra.mxu0 0
  %284 = vmatprep.subr.bf16.mxu0 0
  %285 = vmatpush1.bf16.msra.mxu0 %v76
  %286 = vmatprep.subr.bf16.mxu0 0
  %287 = vmatpush1.bf16.msra.mxu0 %v75
  %288 = vmatprep.subr.bf16.mxu0 0
  %289 = vmatpush2.bf16.msra.mxu0 0
  %290 = vmatprep.subr.bf16.mxu0 0
  %291 = vmatpush2.bf16.msra.mxu0 0
  %292 = vmatprep.subr.bf16.mxu0 0
  %293 = vmatpush2.bf16.msra.mxu0 0
  %294 = vmatprep.subr.bf16.mxu0 0
  %295 = vmatpush2.bf16.msra.mxu0 0
  %296 = vmatprep.subr.bf16.mxu0 0
  %297 = vmatpush2.bf16.msra.mxu0 0
  %298 = vmatprep.subr.bf16.mxu0 0
  %299 = vmatpush2.bf16.msra.mxu0 0
  %300 = vmatprep.subr.bf16.mxu0 0
  %301 = vmatpush2.bf16.msra.mxu0 0
  %302 = vmatprep.subr.bf16.mxu0 0
  %303 = vmatpush2.bf16.msra.mxu0 0
  %304 = vmatprep.mubr.bf16.mxu0 0
  %305 = vmatmul.mubr.bf16.gmra.mxu0 %v270
  %v306 = vpop.f32.mrf.mxu0
  %v307 = vadd.f32 0.0, %v306
  %v308 = vpop.f32.mrf.mxu0
  %v309 = vpop.f32.mrf.mxu0
  %v310 = vpop.f32.mrf.mxu0
  %311 = vdwg.mxu0
  %v312 = vadd.f32 %v264, %v307
  %v313 = vxor.u32 %v312, 2147483648
  %v314 = vmul.f32 %v313, 1.442695
  %v315 = vpow.pop %v314
  %v316 = vadd.f32 %v315, 1.0
  %v317 = vrcp.pop %v316
  %v318 = vmul.f32 1.0, %v317
  %v319 = vtanh.pop %v312
  %v320 = vmul.f32 %v318, %v145
  %322 = vrot.lane.b32.xlu0 %v319, 64
  %v323 = vpop.permute.xlu0 %322
  %v325 = vmul.f32 %v318, %v323
  %327 = vrot.lane.b32.xlu0 %v325, 32
  %v328 = vpop.permute.xlu0 %327
  %v330 = vadd.f32 %v320, %v328
  %v331 = vtanh.pop %v330
  %333 = vrot.lane.b32.xlu0 %v331, 64
  %v334 = vpop.permute.xlu0 %333
  %v336 = vmul.f32 %v318, %v334
  %338 = vrot.lane.b32.xlu0 %v336, 32
  %v339 = vpop.permute.xlu0 %338
  %341 = vrot.lane.b32.xlu0 %v257, 64
  %v342 = vpop.permute.xlu0 %341
  %v344 = vsel %vm79, %v339, %v342
  %v345 = vpack.c.bf16 %v344, %v344
  %v347 = vsel %vm186, %v345, 0
  %349 = vmatprep.subr.bf16.mxu0 0
  %350 = vmatpush1.bf16.msra.mxu0 0
  %351 = vmatprep.subr.bf16.mxu0 0
  %352 = vmatpush1.bf16.msra.mxu0 0
  %353 = vmatprep.subr.bf16.mxu0 0
  %354 = vmatpush1.bf16.msra.mxu0 0
  %355 = vmatprep.subr.bf16.mxu0 0
  %356 = vmatpush1.bf16.msra.mxu0 0
  %357 = vmatprep.subr.bf16.mxu0 0
  %358 = vmatpush1.bf16.msra.mxu0 %v181
  %359 = vmatprep.subr.bf16.mxu0 0
  %360 = vmatpush1.bf16.msra.mxu0 %v180
  %361 = vmatprep.subr.bf16.mxu0 0
  %362 = vmatpush1.bf16.msra.mxu0 %v179
  %363 = vmatprep.subr.bf16.mxu0 0
  %364 = vmatpush1.bf16.msra.mxu0 %v178
  %365 = vmatprep.subr.bf16.mxu0 0
  %366 = vmatpush2.bf16.msra.mxu0 0
  %367 = vmatprep.subr.bf16.mxu0 0
  %368 = vmatpush2.bf16.msra.mxu0 0
  %369 = vmatprep.subr.bf16.mxu0 0
  %370 = vmatpush2.bf16.msra.mxu0 0
  %371 = vmatprep.subr.bf16.mxu0 0
  %372 = vmatpush2.bf16.msra.mxu0 0
  %373 = vmatprep.subr.bf16.mxu0 0
  %374 = vmatpush2.bf16.msra.mxu0 0
  %375 = vmatprep.subr.bf16.mxu0 0
  %376 = vmatpush2.bf16.msra.mxu0 0
  %377 = vmatprep.subr.bf16.mxu0 0
  %378 = vmatpush2.bf16.msra.mxu0 0
  %379 = vmatprep.subr.bf16.mxu0 0
  %380 = vmatpush2.bf16.msra.mxu0 0
  %381 = vmatprep.mubr.bf16.mxu0 0
  %382 = vmatmul.mubr.bf16.gmra.mxu0 %v347
  %v383 = vpop.f32.mrf.mxu0
  %v384 = vadd.f32 %v57, %v383
  %v385 = vpop.f32.mrf.mxu0
  %v386 = vpop.f32.mrf.mxu0
  %v387 = vpop.f32.mrf.mxu0
  %388 = vdwg.mxu0
  %v389 = vxor.u32 %v384, 2147483648
  %v390 = vmul.f32 %v389, 1.442695
  %v391 = vpow.pop %v390
  %v392 = vadd.f32 %v391, 1.0
  %v393 = vrcp.pop %v392
  %v394 = vmul.f32 1.0, %v393
  %v395 = vtanh.pop %v384
  %v396 = vmul.f32 %v394, %v251
  %398 = vrot.lane.b32.xlu0 %v395, 64
  %v399 = vpop.permute.xlu0 %398
  %v401 = vmul.f32 %v394, %v399
  %403 = vrot.lane.b32.xlu0 %v401, 32
  %v404 = vpop.permute.xlu0 %403
  %v406 = vadd.f32 %v396, %v404
  %v407 = vtanh.pop %v406
  %409 = vrot.lane.b32.xlu0 %v407, 64
  %v410 = vpop.permute.xlu0 %409
  %v412 = vmul.f32 %v394, %v410
  %414 = vrot.lane.b32.xlu0 %v412, 32
  %v415 = vpop.permute.xlu0 %414
  %s417 = scalar_lea.vmem %s6, 8
  %418 = vst.msk [vmem:[%s417] sm:$0xff] %vm79, %v415
  %s419 = scalar_lea.vmem %s0, 16
  %v420 = vld [vmem:[%s419] sm:$0xff]
  %v421 = vpack.c.bf16 %v336, %v336
  %423 = vrot.lane.b32.xlu0 %v421, 32
  %v424 = vpop.permute.xlu0 %423
  %v426 = vsel %vm79, %v424, 0
  %428 = vmatprep.subr.bf16.mxu0 0
  %429 = vmatpush1.bf16.msra.mxu0 0
  %430 = vmatprep.subr.bf16.mxu0 0
  %431 = vmatpush1.bf16.msra.mxu0 0
  %432 = vmatprep.subr.bf16.mxu0 0
  %433 = vmatpush1.bf16.msra.mxu0 0
  %434 = vmatprep.subr.bf16.mxu0 0
  %435 = vmatpush1.bf16.msra.mxu0 0
  %436 = vmatprep.subr.bf16.mxu0 0
  %437 = vmatpush1.bf16.msra.mxu0 0
  %438 = vmatprep.subr.bf16.mxu0 0
  %439 = vmatpush1.bf16.msra.mxu0 0
  %440 = vmatprep.subr.bf16.mxu0 0
  %441 = vmatpush1.bf16.msra.mxu0 %v76
  %442 = vmatprep.subr.bf16.mxu0 0
  %443 = vmatpush1.bf16.msra.mxu0 %v75
  %444 = vmatprep.subr.bf16.mxu0 0
  %445 = vmatpush2.bf16.msra.mxu0 0
  %446 = vmatprep.subr.bf16.mxu0 0
  %447 = vmatpush2.bf16.msra.mxu0 0
  %448 = vmatprep.subr.bf16.mxu0 0
  %449 = vmatpush2.bf16.msra.mxu0 0
  %450 = vmatprep.subr.bf16.mxu0 0
  %451 = vmatpush2.bf16.msra.mxu0 0
  %452 = vmatprep.subr.bf16.mxu0 0
  %453 = vmatpush2.bf16.msra.mxu0 0
  %454 = vmatprep.subr.bf16.mxu0 0
  %455 = vmatpush2.bf16.msra.mxu0 0
  %456 = vmatprep.subr.bf16.mxu0 0
  %457 = vmatpush2.bf16.msra.mxu0 0
  %458 = vmatprep.subr.bf16.mxu0 0
  %459 = vmatpush2.bf16.msra.mxu0 0
  %460 = vmatprep.mubr.bf16.mxu0 0
  %461 = vmatmul.mubr.bf16.gmra.mxu0 %v426
  %v462 = vpop.f32.mrf.mxu0
  %v463 = vadd.f32 0.0, %v462
  %v464 = vpop.f32.mrf.mxu0
  %v465 = vpop.f32.mrf.mxu0
  %v466 = vpop.f32.mrf.mxu0
  %467 = vdwg.mxu0
  %v468 = vadd.f32 %v420, %v463
  %v469 = vxor.u32 %v468, 2147483648
  %v470 = vmul.f32 %v469, 1.442695
  %v471 = vpow.pop %v470
  %v472 = vadd.f32 %v471, 1.0
  %v473 = vrcp.pop %v472
  %v474 = vmul.f32 1.0, %v473
  %v475 = vtanh.pop %v468
  %v476 = vmul.f32 %v474, %v330
  %478 = vrot.lane.b32.xlu0 %v475, 64
  %v479 = vpop.permute.xlu0 %478
  %v481 = vmul.f32 %v474, %v479
  %483 = vrot.lane.b32.xlu0 %v481, 32
  %v484 = vpop.permute.xlu0 %483
  %v486 = vadd.f32 %v476, %v484
  %v487 = vtanh.pop %v486
  %489 = vrot.lane.b32.xlu0 %v487, 64
  %v490 = vpop.permute.xlu0 %489
  %v492 = vmul.f32 %v474, %v490
  %494 = vrot.lane.b32.xlu0 %v492, 32
  %v495 = vpop.permute.xlu0 %494
  %497 = vrot.lane.b32.xlu0 %v412, 64
  %v498 = vpop.permute.xlu0 %497
  %v500 = vsel %vm79, %v495, %v498
  %v501 = vpack.c.bf16 %v500, %v500
  %v503 = vsel %vm186, %v501, 0
  %505 = vmatprep.subr.bf16.mxu0 0
  %506 = vmatpush1.bf16.msra.mxu0 0
  %507 = vmatprep.subr.bf16.mxu0 0
  %508 = vmatpush1.bf16.msra.mxu0 0
  %509 = vmatprep.subr.bf16.mxu0 0
  %510 = vmatpush1.bf16.msra.mxu0 0
  %511 = vmatprep.subr.bf16.mxu0 0
  %512 = vmatpush1.bf16.msra.mxu0 0
  %513 = vmatprep.subr.bf16.mxu0 0
  %514 = vmatpush1.bf16.msra.mxu0 %v181
  %515 = vmatprep.subr.bf16.mxu0 0
  %516 = vmatpush1.bf16.msra.mxu0 %v180
  %517 = vmatprep.subr.bf16.mxu0 0
  %518 = vmatpush1.bf16.msra.mxu0 %v179
  %519 = vmatprep.subr.bf16.mxu0 0
  %520 = vmatpush1.bf16.msra.mxu0 %v178
  %521 = vmatprep.subr.bf16.mxu0 0
  %522 = vmatpush2.bf16.msra.mxu0 0
  %523 = vmatprep.subr.bf16.mxu0 0
  %524 = vmatpush2.bf16.msra.mxu0 0
  %525 = vmatprep.subr.bf16.mxu0 0
  %526 = vmatpush2.bf16.msra.mxu0 0
  %527 = vmatprep.subr.bf16.mxu0 0
  %528 = vmatpush2.bf16.msra.mxu0 0
  %529 = vmatprep.subr.bf16.mxu0 0
  %530 = vmatpush2.bf16.msra.mxu0 0
  %531 = vmatprep.subr.bf16.mxu0 0
  %532 = vmatpush2.bf16.msra.mxu0 0
  %533 = vmatprep.subr.bf16.mxu0 0
  %534 = vmatpush2.bf16.msra.mxu0 0
  %535 = vmatprep.subr.bf16.mxu0 0
  %536 = vmatpush2.bf16.msra.mxu0 0
  %537 = vmatprep.mubr.bf16.mxu0 0
  %538 = vmatmul.mubr.bf16.gmra.mxu0 %v503
  %v539 = vpop.f32.mrf.mxu0
  %v540 = vadd.f32 %v57, %v539
  %v541 = vpop.f32.mrf.mxu0
  %v542 = vpop.f32.mrf.mxu0
  %v543 = vpop.f32.mrf.mxu0
  %544 = vdwg.mxu0
  %v545 = vxor.u32 %v540, 2147483648
  %v546 = vmul.f32 %v545, 1.442695
  %v547 = vpow.pop %v546
  %v548 = vadd.f32 %v547, 1.0
  %v549 = vrcp.pop %v548
  %v550 = vmul.f32 1.0, %v549
  %v551 = vtanh.pop %v540
  %v552 = vmul.f32 %v550, %v406
  %554 = vrot.lane.b32.xlu0 %v551, 64
  %v555 = vpop.permute.xlu0 %554
  %v557 = vmul.f32 %v550, %v555
  %559 = vrot.lane.b32.xlu0 %v557, 32
  %v560 = vpop.permute.xlu0 %559
  %v562 = vadd.f32 %v552, %v560
  %v563 = vtanh.pop %v562
  %565 = vrot.lane.b32.xlu0 %v563, 64
  %v566 = vpop.permute.xlu0 %565
  %v568 = vmul.f32 %v550, %v566
  %570 = vrot.lane.b32.xlu0 %v568, 32
  %v571 = vpop.permute.xlu0 %570
  %s573 = scalar_lea.vmem %s6, 16
  %574 = vst.msk [vmem:[%s573] sm:$0xff] %vm79, %v571
  %s575 = scalar_lea.vmem %s0, 24
  %v576 = vld [vmem:[%s575] sm:$0xff]
  %v577 = vpack.c.bf16 %v492, %v492
  %579 = vrot.lane.b32.xlu0 %v577, 32
  %v580 = vpop.permute.xlu0 %579
  %v582 = vsel %vm79, %v580, 0
  %584 = vmatprep.subr.bf16.mxu0 0
  %585 = vmatpush1.bf16.msra.mxu0 0
  %586 = vmatprep.subr.bf16.mxu0 0
  %587 = vmatpush1.bf16.msra.mxu0 0
  %588 = vmatprep.subr.bf16.mxu0 0
  %589 = vmatpush1.bf16.msra.mxu0 0
  %590 = vmatprep.subr.bf16.mxu0 0
  %591 = vmatpush1.bf16.msra.mxu0 0
  %592 = vmatprep.subr.bf16.mxu0 0
  %593 = vmatpush1.bf16.msra.mxu0 0
  %594 = vmatprep.subr.bf16.mxu0 0
  %595 = vmatpush1.bf16.msra.mxu0 0
  %596 = vmatprep.subr.bf16.mxu0 0
  %597 = vmatpush1.bf16.msra.mxu0 %v76
  %598 = vmatprep.subr.bf16.mxu0 0
  %599 = vmatpush1.bf16.msra.mxu0 %v75
  %600 = vmatprep.subr.bf16.mxu0 0
  %601 = vmatpush2.bf16.msra.mxu0 0
  %602 = vmatprep.subr.bf16.mxu0 0
  %603 = vmatpush2.bf16.msra.mxu0 0
  %604 = vmatprep.subr.bf16.mxu0 0
  %605 = vmatpush2.bf16.msra.mxu0 0
  %606 = vmatprep.subr.bf16.mxu0 0
  %607 = vmatpush2.bf16.msra.mxu0 0
  %608 = vmatprep.subr.bf16.mxu0 0
  %609 = vmatpush2.bf16.msra.mxu0 0
  %610 = vmatprep.subr.bf16.mxu0 0
  %611 = vmatpush2.bf16.msra.mxu0 0
  %612 = vmatprep.subr.bf16.mxu0 0
  %613 = vmatpush2.bf16.msra.mxu0 0
  %614 = vmatprep.subr.bf16.mxu0 0
  %615 = vmatpush2.bf16.msra.mxu0 0
  %616 = vmatprep.mubr.bf16.mxu0 0
  %617 = vmatmul.mubr.bf16.gmra.mxu0 %v582
  %v618 = vpop.f32.mrf.mxu0
  %v619 = vadd.f32 0.0, %v618
  %v620 = vpop.f32.mrf.mxu0
  %v621 = vpop.f32.mrf.mxu0
  %v622 = vpop.f32.mrf.mxu0
  %623 = vdwg.mxu0
  %v624 = vadd.f32 %v576, %v619
  %v625 = vxor.u32 %v624, 2147483648
  %v626 = vmul.f32 %v625, 1.442695
  %v627 = vpow.pop %v626
  %v628 = vadd.f32 %v627, 1.0
  %v629 = vrcp.pop %v628
  %v630 = vmul.f32 1.0, %v629
  %v631 = vtanh.pop %v624
  %v632 = vmul.f32 %v630, %v486
  %634 = vrot.lane.b32.xlu0 %v631, 64
  %v635 = vpop.permute.xlu0 %634
  %v637 = vmul.f32 %v630, %v635
  %639 = vrot.lane.b32.xlu0 %v637, 32
  %v640 = vpop.permute.xlu0 %639
  %v642 = vadd.f32 %v632, %v640
  %v643 = vtanh.pop %v642
  %645 = vrot.lane.b32.xlu0 %v643, 64
  %v646 = vpop.permute.xlu0 %645
  %v648 = vmul.f32 %v630, %v646
  %650 = vrot.lane.b32.xlu0 %v648, 32
  %v651 = vpop.permute.xlu0 %650
  %653 = vrot.lane.b32.xlu0 %v568, 64
  %v654 = vpop.permute.xlu0 %653
  %v656 = vsel %vm79, %v651, %v654
  %v657 = vpack.c.bf16 %v656, %v656
  %v659 = vsel %vm186, %v657, 0
  %661 = vmatprep.subr.bf16.mxu0 0
  %662 = vmatpush1.bf16.msra.mxu0 0
  %663 = vmatprep.subr.bf16.mxu0 0
  %664 = vmatpush1.bf16.msra.mxu0 0
  %665 = vmatprep.subr.bf16.mxu0 0
  %666 = vmatpush1.bf16.msra.mxu0 0
  %667 = vmatprep.subr.bf16.mxu0 0
  %668 = vmatpush1.bf16.msra.mxu0 0
  %669 = vmatprep.subr.bf16.mxu0 0
  %670 = vmatpush1.bf16.msra.mxu0 %v181
  %671 = vmatprep.subr.bf16.mxu0 0
  %672 = vmatpush1.bf16.msra.mxu0 %v180
  %673 = vmatprep.subr.bf16.mxu0 0
  %674 = vmatpush1.bf16.msra.mxu0 %v179
  %675 = vmatprep.subr.bf16.mxu0 0
  %676 = vmatpush1.bf16.msra.mxu0 %v178
  %677 = vmatprep.subr.bf16.mxu0 0
  %678 = vmatpush2.bf16.msra.mxu0 0
  %679 = vmatprep.subr.bf16.mxu0 0
  %680 = vmatpush2.bf16.msra.mxu0 0
  %681 = vmatprep.subr.bf16.mxu0 0
  %682 = vmatpush2.bf16.msra.mxu0 0
  %683 = vmatprep.subr.bf16.mxu0 0
  %684 = vmatpush2.bf16.msra.mxu0 0
  %685 = vmatprep.subr.bf16.mxu0 0
  %686 = vmatpush2.bf16.msra.mxu0 0
  %687 = vmatprep.subr.bf16.mxu0 0
  %688 = vmatpush2.bf16.msra.mxu0 0
  %689 = vmatprep.subr.bf16.mxu0 0
  %690 = vmatpush2.bf16.msra.mxu0 0
  %691 = vmatprep.subr.bf16.mxu0 0
  %692 = vmatpush2.bf16.msra.mxu0 0
  %693 = vmatprep.mubr.bf16.mxu0 0
  %694 = vmatmul.mubr.bf16.gmra.mxu0 %v659
  %v695 = vpop.f32.mrf.mxu0
  %v696 = vadd.f32 %v57, %v695
  %v697 = vpop.f32.mrf.mxu0
  %v698 = vpop.f32.mrf.mxu0
  %v699 = vpop.f32.mrf.mxu0
  %700 = vdwg.mxu0
  %v701 = vxor.u32 %v696, 2147483648
  %v702 = vmul.f32 %v701, 1.442695
  %v703 = vpow.pop %v702
  %v704 = vadd.f32 %v703, 1.0
  %v705 = vrcp.pop %v704
  %v706 = vmul.f32 1.0, %v705
  %v707 = vtanh.pop %v696
  %v708 = vmul.f32 %v706, %v562
  %710 = vrot.lane.b32.xlu0 %v707, 64
  %v711 = vpop.permute.xlu0 %710
  %v713 = vmul.f32 %v706, %v711
  %715 = vrot.lane.b32.xlu0 %v713, 32
  %v716 = vpop.permute.xlu0 %715
  %v718 = vadd.f32 %v708, %v716
  %v719 = vtanh.pop %v718
  %721 = vrot.lane.b32.xlu0 %v719, 64
  %v722 = vpop.permute.xlu0 %721
  %v724 = vmul.f32 %v706, %v722
  %726 = vrot.lane.b32.xlu0 %v724, 32
  %v727 = vpop.permute.xlu0 %726
  %s729 = scalar_lea.vmem %s6, 24
  %730 = vst.msk [vmem:[%s729] sm:$0xff] %vm79, %v727
  %s731 = scalar_lea.vmem %s0, 32
  %v732 = vld [vmem:[%s731] sm:$0xff]
  %v733 = vpack.c.bf16 %v648, %v648
  %735 = vrot.lane.b32.xlu0 %v733, 32
  %v736 = vpop.permute.xlu0 %735
  %v738 = vsel %vm79, %v736, 0
  %740 = vmatprep.subr.bf16.mxu0 0
  %741 = vmatpush1.bf16.msra.mxu0 0
  %742 = vmatprep.subr.bf16.mxu0 0
  %743 = vmatpush1.bf16.msra.mxu0 0
  %744 = vmatprep.subr.bf16.mxu0 0
  %745 = vmatpush1.bf16.msra.mxu0 0
  %746 = vmatprep.subr.bf16.mxu0 0
  %747 = vmatpush1.bf16.msra.mxu0 0
  %748 = vmatprep.subr.bf16.mxu0 0
  %749 = vmatpush1.bf16.msra.mxu0 0
  %750 = vmatprep.subr.bf16.mxu0 0
  %751 = vmatpush1.bf16.msra.mxu0 0
  %752 = vmatprep.subr.bf16.mxu0 0
  %753 = vmatpush1.bf16.msra.mxu0 %v76
  %754 = vmatprep.subr.bf16.mxu0 0
  %755 = vmatpush1.bf16.msra.mxu0 %v75
  %756 = vmatprep.subr.bf16.mxu0 0
  %757 = vmatpush2.bf16.msra.mxu0 0
  %758 = vmatprep.subr.bf16.mxu0 0
  %759 = vmatpush2.bf16.msra.mxu0 0
  %760 = vmatprep.subr.bf16.mxu0 0
  %761 = vmatpush2.bf16.msra.mxu0 0
  %762 = vmatprep.subr.bf16.mxu0 0
  %763 = vmatpush2.bf16.msra.mxu0 0
  %764 = vmatprep.subr.bf16.mxu0 0
  %765 = vmatpush2.bf16.msra.mxu0 0
  %766 = vmatprep.subr.bf16.mxu0 0
  %767 = vmatpush2.bf16.msra.mxu0 0
  %768 = vmatprep.subr.bf16.mxu0 0
  %769 = vmatpush2.bf16.msra.mxu0 0
  %770 = vmatprep.subr.bf16.mxu0 0
  %771 = vmatpush2.bf16.msra.mxu0 0
  %772 = vmatprep.mubr.bf16.mxu0 0
  %773 = vmatmul.mubr.bf16.gmra.mxu0 %v738
  %v774 = vpop.f32.mrf.mxu0
  %v775 = vadd.f32 0.0, %v774
  %v776 = vpop.f32.mrf.mxu0
  %v777 = vpop.f32.mrf.mxu0
  %v778 = vpop.f32.mrf.mxu0
  %779 = vdwg.mxu0
  %v780 = vadd.f32 %v732, %v775
  %v781 = vxor.u32 %v780, 2147483648
  %v782 = vmul.f32 %v781, 1.442695
  %v783 = vpow.pop %v782
  %v784 = vadd.f32 %v783, 1.0
  %v785 = vrcp.pop %v784
  %v786 = vmul.f32 1.0, %v785
  %v787 = vtanh.pop %v780
  %v788 = vmul.f32 %v786, %v642
  %790 = vrot.lane.b32.xlu0 %v787, 64
  %v791 = vpop.permute.xlu0 %790
  %v793 = vmul.f32 %v786, %v791
  %795 = vrot.lane.b32.xlu0 %v793, 32
  %v796 = vpop.permute.xlu0 %795
  %v798 = vadd.f32 %v788, %v796
  %v799 = vtanh.pop %v798
  %801 = vrot.lane.b32.xlu0 %v799, 64
  %v802 = vpop.permute.xlu0 %801
  %v804 = vmul.f32 %v786, %v802
  %806 = vrot.lane.b32.xlu0 %v804, 32
  %v807 = vpop.permute.xlu0 %806
  %809 = vrot.lane.b32.xlu0 %v724, 64
  %v810 = vpop.permute.xlu0 %809
  %v812 = vsel %vm79, %v807, %v810
  %v813 = vpack.c.bf16 %v812, %v812
  %v815 = vsel %vm186, %v813, 0
  %817 = vmatprep.subr.bf16.mxu0 0
  %818 = vmatpush1.bf16.msra.mxu0 0
  %819 = vmatprep.subr.bf16.mxu0 0
  %820 = vmatpush1.bf16.msra.mxu0 0
  %821 = vmatprep.subr.bf16.mxu0 0
  %822 = vmatpush1.bf16.msra.mxu0 0
  %823 = vmatprep.subr.bf16.mxu0 0
  %824 = vmatpush1.bf16.msra.mxu0 0
  %825 = vmatprep.subr.bf16.mxu0 0
  %826 = vmatpush1.bf16.msra.mxu0 %v181
  %827 = vmatprep.subr.bf16.mxu0 0
  %828 = vmatpush1.bf16.msra.mxu0 %v180
  %829 = vmatprep.subr.bf16.mxu0 0
  %830 = vmatpush1.bf16.msra.mxu0 %v179
  %831 = vmatprep.subr.bf16.mxu0 0
  %832 = vmatpush1.bf16.msra.mxu0 %v178
  %833 = vmatprep.subr.bf16.mxu0 0
  %834 = vmatpush2.bf16.msra.mxu0 0
  %835 = vmatprep.subr.bf16.mxu0 0
  %836 = vmatpush2.bf16.msra.mxu0 0
  %837 = vmatprep.subr.bf16.mxu0 0
  %838 = vmatpush2.bf16.msra.mxu0 0
  %839 = vmatprep.subr.bf16.mxu0 0
  %840 = vmatpush2.bf16.msra.mxu0 0
  %841 = vmatprep.subr.bf16.mxu0 0
  %842 = vmatpush2.bf16.msra.mxu0 0
  %843 = vmatprep.subr.bf16.mxu0 0
  %844 = vmatpush2.bf16.msra.mxu0 0
  %845 = vmatprep.subr.bf16.mxu0 0
  %846 = vmatpush2.bf16.msra.mxu0 0
  %847 = vmatprep.subr.bf16.mxu0 0
  %848 = vmatpush2.bf16.msra.mxu0 0
  %849 = vmatprep.mubr.bf16.mxu0 0
  %850 = vmatmul.mubr.bf16.gmra.mxu0 %v815
  %v851 = vpop.f32.mrf.mxu0
  %v852 = vadd.f32 %v57, %v851
  %v853 = vpop.f32.mrf.mxu0
  %v854 = vpop.f32.mrf.mxu0
  %v855 = vpop.f32.mrf.mxu0
  %856 = vdwg.mxu0
  %v857 = vxor.u32 %v852, 2147483648
  %v858 = vmul.f32 %v857, 1.442695
  %v859 = vpow.pop %v858
  %v860 = vadd.f32 %v859, 1.0
  %v861 = vrcp.pop %v860
  %v862 = vmul.f32 1.0, %v861
  %v863 = vtanh.pop %v852
  %v864 = vmul.f32 %v862, %v718
  %866 = vrot.lane.b32.xlu0 %v863, 64
  %v867 = vpop.permute.xlu0 %866
  %v869 = vmul.f32 %v862, %v867
  %871 = vrot.lane.b32.xlu0 %v869, 32
  %v872 = vpop.permute.xlu0 %871
  %v874 = vadd.f32 %v864, %v872
  %v875 = vtanh.pop %v874
  %877 = vrot.lane.b32.xlu0 %v875, 64
  %v878 = vpop.permute.xlu0 %877
  %v880 = vmul.f32 %v862, %v878
  %882 = vrot.lane.b32.xlu0 %v880, 32
  %v883 = vpop.permute.xlu0 %882
  %s885 = scalar_lea.vmem %s6, 32
  %886 = vst.msk [vmem:[%s885] sm:$0xff] %vm79, %v883
  %s887 = scalar_lea.vmem %s0, 40
  %v888 = vld [vmem:[%s887] sm:$0xff]
  %v889 = vpack.c.bf16 %v804, %v804
  %891 = vrot.lane.b32.xlu0 %v889, 32
  %v892 = vpop.permute.xlu0 %891
  %v894 = vsel %vm79, %v892, 0
  %896 = vmatprep.subr.bf16.mxu0 0
  %897 = vmatpush1.bf16.msra.mxu0 0
  %898 = vmatprep.subr.bf16.mxu0 0
  %899 = vmatpush1.bf16.msra.mxu0 0
  %900 = vmatprep.subr.bf16.mxu0 0
  %901 = vmatpush1.bf16.msra.mxu0 0
  %902 = vmatprep.subr.bf16.mxu0 0
  %903 = vmatpush1.bf16.msra.mxu0 0
  %904 = vmatprep.subr.bf16.mxu0 0
  %905 = vmatpush1.bf16.msra.mxu0 0
  %906 = vmatprep.subr.bf16.mxu0 0
  %907 = vmatpush1.bf16.msra.mxu0 0
  %908 = vmatprep.subr.bf16.mxu0 0
  %909 = vmatpush1.bf16.msra.mxu0 %v76
  %910 = vmatprep.subr.bf16.mxu0 0
  %911 = vmatpush1.bf16.msra.mxu0 %v75
  %912 = vmatprep.subr.bf16.mxu0 0
  %913 = vmatpush2.bf16.msra.mxu0 0
  %914 = vmatprep.subr.bf16.mxu0 0
  %915 = vmatpush2.bf16.msra.mxu0 0
  %916 = vmatprep.subr.bf16.mxu0 0
  %917 = vmatpush2.bf16.msra.mxu0 0
  %918 = vmatprep.subr.bf16.mxu0 0
  %919 = vmatpush2.bf16.msra.mxu0 0
  %920 = vmatprep.subr.bf16.mxu0 0
  %921 = vmatpush2.bf16.msra.mxu0 0
  %922 = vmatprep.subr.bf16.mxu0 0
  %923 = vmatpush2.bf16.msra.mxu0 0
  %924 = vmatprep.subr.bf16.mxu0 0
  %925 = vmatpush2.bf16.msra.mxu0 0
  %926 = vmatprep.subr.bf16.mxu0 0
  %927 = vmatpush2.bf16.msra.mxu0 0
  %928 = vmatprep.mubr.bf16.mxu0 0
  %929 = vmatmul.mubr.bf16.gmra.mxu0 %v894
  %v930 = vpop.f32.mrf.mxu0
  %v931 = vadd.f32 0.0, %v930
  %v932 = vpop.f32.mrf.mxu0
  %v933 = vpop.f32.mrf.mxu0
  %v934 = vpop.f32.mrf.mxu0
  %935 = vdwg.mxu0
  %v936 = vadd.f32 %v888, %v931
  %v937 = vxor.u32 %v936, 2147483648
  %v938 = vmul.f32 %v937, 1.442695
  %v939 = vpow.pop %v938
  %v940 = vadd.f32 %v939, 1.0
  %v941 = vrcp.pop %v940
  %v942 = vmul.f32 1.0, %v941
  %v943 = vtanh.pop %v936
  %v944 = vmul.f32 %v942, %v798
  %946 = vrot.lane.b32.xlu0 %v943, 64
  %v947 = vpop.permute.xlu0 %946
  %v949 = vmul.f32 %v942, %v947
  %951 = vrot.lane.b32.xlu0 %v949, 32
  %v952 = vpop.permute.xlu0 %951
  %v954 = vadd.f32 %v944, %v952
  %v955 = vtanh.pop %v954
  %957 = vrot.lane.b32.xlu0 %v955, 64
  %v958 = vpop.permute.xlu0 %957
  %v960 = vmul.f32 %v942, %v958
  %962 = vrot.lane.b32.xlu0 %v960, 32
  %v963 = vpop.permute.xlu0 %962
  %965 = vrot.lane.b32.xlu0 %v880, 64
  %v966 = vpop.permute.xlu0 %965
  %v968 = vsel %vm79, %v963, %v966
  %v969 = vpack.c.bf16 %v968, %v968
  %v971 = vsel %vm186, %v969, 0
  %973 = vmatprep.subr.bf16.mxu0 0
  %974 = vmatpush1.bf16.msra.mxu0 0
  %975 = vmatprep.subr.bf16.mxu0 0
  %976 = vmatpush1.bf16.msra.mxu0 0
  %977 = vmatprep.subr.bf16.mxu0 0
  %978 = vmatpush1.bf16.msra.mxu0 0
  %979 = vmatprep.subr.bf16.mxu0 0
  %980 = vmatpush1.bf16.msra.mxu0 0
  %981 = vmatprep.subr.bf16.mxu0 0
  %982 = vmatpush1.bf16.msra.mxu0 %v181
  %983 = vmatprep.subr.bf16.mxu0 0
  %984 = vmatpush1.bf16.msra.mxu0 %v180
  %985 = vmatprep.subr.bf16.mxu0 0
  %986 = vmatpush1.bf16.msra.mxu0 %v179
  %987 = vmatprep.subr.bf16.mxu0 0
  %988 = vmatpush1.bf16.msra.mxu0 %v178
  %989 = vmatprep.subr.bf16.mxu0 0
  %990 = vmatpush2.bf16.msra.mxu0 0
  %991 = vmatprep.subr.bf16.mxu0 0
  %992 = vmatpush2.bf16.msra.mxu0 0
  %993 = vmatprep.subr.bf16.mxu0 0
  %994 = vmatpush2.bf16.msra.mxu0 0
  %995 = vmatprep.subr.bf16.mxu0 0
  %996 = vmatpush2.bf16.msra.mxu0 0
  %997 = vmatprep.subr.bf16.mxu0 0
  %998 = vmatpush2.bf16.msra.mxu0 0
  %999 = vmatprep.subr.bf16.mxu0 0
  %1000 = vmatpush2.bf16.msra.mxu0 0
  %1001 = vmatprep.subr.bf16.mxu0 0
  %1002 = vmatpush2.bf16.msra.mxu0 0
  %1003 = vmatprep.subr.bf16.mxu0 0
  %1004 = vmatpush2.bf16.msra.mxu0 0
  %1005 = vmatprep.mubr.bf16.mxu0 0
  %1006 = vmatmul.mubr.bf16.gmra.mxu0 %v971
  %v1007 = vpop.f32.mrf.mxu0
  %v1008 = vadd.f32 %v57, %v1007
  %v1009 = vpop.f32.mrf.mxu0
  %v1010 = vpop.f32.mrf.mxu0
  %v1011 = vpop.f32.mrf.mxu0
  %1012 = vdwg.mxu0
  %v1013 = vxor.u32 %v1008, 2147483648
  %v1014 = vmul.f32 %v1013, 1.442695
  %v1015 = vpow.pop %v1014
  %v1016 = vadd.f32 %v1015, 1.0
  %v1017 = vrcp.pop %v1016
  %v1018 = vmul.f32 1.0, %v1017
  %v1019 = vtanh.pop %v1008
  %v1020 = vmul.f32 %v1018, %v874
  %1022 = vrot.lane.b32.xlu0 %v1019, 64
  %v1023 = vpop.permute.xlu0 %1022
  %v1025 = vmul.f32 %v1018, %v1023
  %1027 = vrot.lane.b32.xlu0 %v1025, 32
  %v1028 = vpop.permute.xlu0 %1027
  %v1030 = vadd.f32 %v1020, %v1028
  %v1031 = vtanh.pop %v1030
  %1033 = vrot.lane.b32.xlu0 %v1031, 64
  %v1034 = vpop.permute.xlu0 %1033
  %v1036 = vmul.f32 %v1018, %v1034
  %1038 = vrot.lane.b32.xlu0 %v1036, 32
  %v1039 = vpop.permute.xlu0 %1038
  %s1041 = scalar_lea.vmem %s6, 40
  %1042 = vst.msk [vmem:[%s1041] sm:$0xff] %vm79, %v1039
  %s1043 = scalar_lea.vmem %s0, 48
  %v1044 = vld [vmem:[%s1043] sm:$0xff]
  %v1045 = vpack.c.bf16 %v960, %v960
  %1047 = vrot.lane.b32.xlu0 %v1045, 32
  %v1048 = vpop.permute.xlu0 %1047
  %v1050 = vsel %vm79, %v1048, 0
  %1052 = vmatprep.subr.bf16.mxu0 0
  %1053 = vmatpush1.bf16.msra.mxu0 0
  %1054 = vmatprep.subr.bf16.mxu0 0
  %1055 = vmatpush1.bf16.msra.mxu0 0
  %1056 = vmatprep.subr.bf16.mxu0 0
  %1057 = vmatpush1.bf16.msra.mxu0 0
  %1058 = vmatprep.subr.bf16.mxu0 0
  %1059 = vmatpush1.bf16.msra.mxu0 0
  %1060 = vmatprep.subr.bf16.mxu0 0
  %1061 = vmatpush1.bf16.msra.mxu0 0
  %1062 = vmatprep.subr.bf16.mxu0 0
  %1063 = vmatpush1.bf16.msra.mxu0 0
  %1064 = vmatprep.subr.bf16.mxu0 0
  %1065 = vmatpush1.bf16.msra.mxu0 %v76
  %1066 = vmatprep.subr.bf16.mxu0 0
  %1067 = vmatpush1.bf16.msra.mxu0 %v75
  %1068 = vmatprep.subr.bf16.mxu0 0
  %1069 = vmatpush2.bf16.msra.mxu0 0
  %1070 = vmatprep.subr.bf16.mxu0 0
  %1071 = vmatpush2.bf16.msra.mxu0 0
  %1072 = vmatprep.subr.bf16.mxu0 0
  %1073 = vmatpush2.bf16.msra.mxu0 0
  %1074 = vmatprep.subr.bf16.mxu0 0
  %1075 = vmatpush2.bf16.msra.mxu0 0
  %1076 = vmatprep.subr.bf16.mxu0 0
  %1077 = vmatpush2.bf16.msra.mxu0 0
  %1078 = vmatprep.subr.bf16.mxu0 0
  %1079 = vmatpush2.bf16.msra.mxu0 0
  %1080 = vmatprep.subr.bf16.mxu0 0
  %1081 = vmatpush2.bf16.msra.mxu0 0
  %1082 = vmatprep.subr.bf16.mxu0 0
  %1083 = vmatpush2.bf16.msra.mxu0 0
  %1084 = vmatprep.mubr.bf16.mxu0 0
  %1085 = vmatmul.mubr.bf16.gmra.mxu0 %v1050
  %v1086 = vpop.f32.mrf.mxu0
  %v1087 = vadd.f32 0.0, %v1086
  %v1088 = vpop.f32.mrf.mxu0
  %v1089 = vpop.f32.mrf.mxu0
  %v1090 = vpop.f32.mrf.mxu0
  %1091 = vdwg.mxu0
  %v1092 = vadd.f32 %v1044, %v1087
  %v1093 = vxor.u32 %v1092, 2147483648
  %v1094 = vmul.f32 %v1093, 1.442695
  %v1095 = vpow.pop %v1094
  %v1096 = vadd.f32 %v1095, 1.0
  %v1097 = vrcp.pop %v1096
  %v1098 = vmul.f32 1.0, %v1097
  %v1099 = vtanh.pop %v1092
  %v1100 = vmul.f32 %v1098, %v954
  %1102 = vrot.lane.b32.xlu0 %v1099, 64
  %v1103 = vpop.permute.xlu0 %1102
  %v1105 = vmul.f32 %v1098, %v1103
  %1107 = vrot.lane.b32.xlu0 %v1105, 32
  %v1108 = vpop.permute.xlu0 %1107
  %v1110 = vadd.f32 %v1100, %v1108
  %v1111 = vtanh.pop %v1110
  %1113 = vrot.lane.b32.xlu0 %v1111, 64
  %v1114 = vpop.permute.xlu0 %1113
  %v1116 = vmul.f32 %v1098, %v1114
  %1118 = vrot.lane.b32.xlu0 %v1116, 32
  %v1119 = vpop.permute.xlu0 %1118
  %1121 = vrot.lane.b32.xlu0 %v1036, 64
  %v1122 = vpop.permute.xlu0 %1121
  %v1124 = vsel %vm79, %v1119, %v1122
  %v1125 = vpack.c.bf16 %v1124, %v1124
  %v1127 = vsel %vm186, %v1125, 0
  %1129 = vmatprep.subr.bf16.mxu0 0
  %1130 = vmatpush1.bf16.msra.mxu0 0
  %1131 = vmatprep.subr.bf16.mxu0 0
  %1132 = vmatpush1.bf16.msra.mxu0 0
  %1133 = vmatprep.subr.bf16.mxu0 0
  %1134 = vmatpush1.bf16.msra.mxu0 0
  %1135 = vmatprep.subr.bf16.mxu0 0
  %1136 = vmatpush1.bf16.msra.mxu0 0
  %1137 = vmatprep.subr.bf16.mxu0 0
  %1138 = vmatpush1.bf16.msra.mxu0 %v181
  %1139 = vmatprep.subr.bf16.mxu0 0
  %1140 = vmatpush1.bf16.msra.mxu0 %v180
  %1141 = vmatprep.subr.bf16.mxu0 0
  %1142 = vmatpush1.bf16.msra.mxu0 %v179
  %1143 = vmatprep.subr.bf16.mxu0 0
  %1144 = vmatpush1.bf16.msra.mxu0 %v178
  %1145 = vmatprep.subr.bf16.mxu0 0
  %1146 = vmatpush2.bf16.msra.mxu0 0
  %1147 = vmatprep.subr.bf16.mxu0 0
  %1148 = vmatpush2.bf16.msra.mxu0 0
  %1149 = vmatprep.subr.bf16.mxu0 0
  %1150 = vmatpush2.bf16.msra.mxu0 0
  %1151 = vmatprep.subr.bf16.mxu0 0
  %1152 = vmatpush2.bf16.msra.mxu0 0
  %1153 = vmatprep.subr.bf16.mxu0 0
  %1154 = vmatpush2.bf16.msra.mxu0 0
  %1155 = vmatprep.subr.bf16.mxu0 0
  %1156 = vmatpush2.bf16.msra.mxu0 0
  %1157 = vmatprep.subr.bf16.mxu0 0
  %1158 = vmatpush2.bf16.msra.mxu0 0
  %1159 = vmatprep.subr.bf16.mxu0 0
  %1160 = vmatpush2.bf16.msra.mxu0 0
  %1161 = vmatprep.mubr.bf16.mxu0 0
  %1162 = vmatmul.mubr.bf16.gmra.mxu0 %v1127
  %v1163 = vpop.f32.mrf.mxu0
  %v1164 = vadd.f32 %v57, %v1163
  %v1165 = vpop.f32.mrf.mxu0
  %v1166 = vpop.f32.mrf.mxu0
  %v1167 = vpop.f32.mrf.mxu0
  %1168 = vdwg.mxu0
  %v1169 = vxor.u32 %v1164, 2147483648
  %v1170 = vmul.f32 %v1169, 1.442695
  %v1171 = vpow.pop %v1170
  %v1172 = vadd.f32 %v1171, 1.0
  %v1173 = vrcp.pop %v1172
  %v1174 = vmul.f32 1.0, %v1173
  %v1175 = vtanh.pop %v1164
  %v1176 = vmul.f32 %v1174, %v1030
  %1178 = vrot.lane.b32.xlu0 %v1175, 64
  %v1179 = vpop.permute.xlu0 %1178
  %v1181 = vmul.f32 %v1174, %v1179
  %1183 = vrot.lane.b32.xlu0 %v1181, 32
  %v1184 = vpop.permute.xlu0 %1183
  %v1186 = vadd.f32 %v1176, %v1184
  %v1187 = vtanh.pop %v1186
  %1189 = vrot.lane.b32.xlu0 %v1187, 64
  %v1190 = vpop.permute.xlu0 %1189
  %v1192 = vmul.f32 %v1174, %v1190
  %1194 = vrot.lane.b32.xlu0 %v1192, 32
  %v1195 = vpop.permute.xlu0 %1194
  %s1197 = scalar_lea.vmem %s6, 48
  %1198 = vst.msk [vmem:[%s1197] sm:$0xff] %vm79, %v1195
  %s1199 = scalar_lea.vmem %s0, 56
  %v1200 = vld [vmem:[%s1199] sm:$0xff]
  %v1201 = vpack.c.bf16 %v1116, %v1116
  %1203 = vrot.lane.b32.xlu0 %v1201, 32
  %v1204 = vpop.permute.xlu0 %1203
  %v1206 = vsel %vm79, %v1204, 0
  %1208 = vmatprep.subr.bf16.mxu0 0
  %1209 = vmatpush1.bf16.msra.mxu0 0
  %1210 = vmatprep.subr.bf16.mxu0 0
  %1211 = vmatpush1.bf16.msra.mxu0 0
  %1212 = vmatprep.subr.bf16.mxu0 0
  %1213 = vmatpush1.bf16.msra.mxu0 0
  %1214 = vmatprep.subr.bf16.mxu0 0
  %1215 = vmatpush1.bf16.msra.mxu0 0
  %1216 = vmatprep.subr.bf16.mxu0 0
  %1217 = vmatpush1.bf16.msra.mxu0 0
  %1218 = vmatprep.subr.bf16.mxu0 0
  %1219 = vmatpush1.bf16.msra.mxu0 0
  %1220 = vmatprep.subr.bf16.mxu0 0
  %1221 = vmatpush1.bf16.msra.mxu0 %v76
  %1222 = vmatprep.subr.bf16.mxu0 0
  %1223 = vmatpush1.bf16.msra.mxu0 %v75
  %1224 = vmatprep.subr.bf16.mxu0 0
  %1225 = vmatpush2.bf16.msra.mxu0 0
  %1226 = vmatprep.subr.bf16.mxu0 0
  %1227 = vmatpush2.bf16.msra.mxu0 0
  %1228 = vmatprep.subr.bf16.mxu0 0
  %1229 = vmatpush2.bf16.msra.mxu0 0
  %1230 = vmatprep.subr.bf16.mxu0 0
  %1231 = vmatpush2.bf16.msra.mxu0 0
  %1232 = vmatprep.subr.bf16.mxu0 0
  %1233 = vmatpush2.bf16.msra.mxu0 0
  %1234 = vmatprep.subr.bf16.mxu0 0
  %1235 = vmatpush2.bf16.msra.mxu0 0
  %1236 = vmatprep.subr.bf16.mxu0 0
  %1237 = vmatpush2.bf16.msra.mxu0 0
  %1238 = vmatprep.subr.bf16.mxu0 0
  %1239 = vmatpush2.bf16.msra.mxu0 0
  %1240 = vmatprep.mubr.bf16.mxu0 0
  %1241 = vmatmul.mubr.bf16.gmra.mxu0 %v1206
  %v1242 = vpop.f32.mrf.mxu0
  %v1243 = vadd.f32 0.0, %v1242
  %v1244 = vpop.f32.mrf.mxu0
  %v1245 = vpop.f32.mrf.mxu0
  %v1246 = vpop.f32.mrf.mxu0
  %1247 = vdwg.mxu0
  %v1248 = vadd.f32 %v1200, %v1243
  %v1249 = vxor.u32 %v1248, 2147483648
  %v1250 = vmul.f32 %v1249, 1.442695
  %v1251 = vpow.pop %v1250
  %v1252 = vadd.f32 %v1251, 1.0
  %v1253 = vrcp.pop %v1252
  %v1254 = vmul.f32 1.0, %v1253
  %v1255 = vtanh.pop %v1248
  %v1256 = vmul.f32 %v1254, %v1110
  %1258 = vrot.lane.b32.xlu0 %v1255, 64
  %v1259 = vpop.permute.xlu0 %1258
  %v1261 = vmul.f32 %v1254, %v1259
  %1263 = vrot.lane.b32.xlu0 %v1261, 32
  %v1264 = vpop.permute.xlu0 %1263
  %v1266 = vadd.f32 %v1256, %v1264
  %v1267 = vtanh.pop %v1266
  %1269 = vrot.lane.b32.xlu0 %v1267, 64
  %v1270 = vpop.permute.xlu0 %1269
  %v1272 = vmul.f32 %v1254, %v1270
  %1274 = vrot.lane.b32.xlu0 %v1272, 32
  %v1275 = vpop.permute.xlu0 %1274
  %1277 = vrot.lane.b32.xlu0 %v1192, 64
  %v1278 = vpop.permute.xlu0 %1277
  %v1280 = vsel %vm79, %v1275, %v1278
  %v1281 = vpack.c.bf16 %v1280, %v1280
  %v1283 = vsel %vm186, %v1281, 0
  %1285 = vmatprep.subr.bf16.mxu0 0
  %1286 = vmatpush1.bf16.msra.mxu0 0
  %1287 = vmatprep.subr.bf16.mxu0 0
  %1288 = vmatpush1.bf16.msra.mxu0 0
  %1289 = vmatprep.subr.bf16.mxu0 0
  %1290 = vmatpush1.bf16.msra.mxu0 0
  %1291 = vmatprep.subr.bf16.mxu0 0
  %1292 = vmatpush1.bf16.msra.mxu0 0
  %1293 = vmatprep.subr.bf16.mxu0 0
  %1294 = vmatpush1.bf16.msra.mxu0 %v181
  %1295 = vmatprep.subr.bf16.mxu0 0
  %1296 = vmatpush1.bf16.msra.mxu0 %v180
  %1297 = vmatprep.subr.bf16.mxu0 0
  %1298 = vmatpush1.bf16.msra.mxu0 %v179
  %1299 = vmatprep.subr.bf16.mxu0 0
  %1300 = vmatpush1.bf16.msra.mxu0 %v178
  %1301 = vmatprep.subr.bf16.mxu0 0
  %1302 = vmatpush2.bf16.msra.mxu0 0
  %1303 = vmatprep.subr.bf16.mxu0 0
  %1304 = vmatpush2.bf16.msra.mxu0 0
  %1305 = vmatprep.subr.bf16.mxu0 0
  %1306 = vmatpush2.bf16.msra.mxu0 0
  %1307 = vmatprep.subr.bf16.mxu0 0
  %1308 = vmatpush2.bf16.msra.mxu0 0
  %1309 = vmatprep.subr.bf16.mxu0 0
  %1310 = vmatpush2.bf16.msra.mxu0 0
  %1311 = vmatprep.subr.bf16.mxu0 0
  %1312 = vmatpush2.bf16.msra.mxu0 0
  %1313 = vmatprep.subr.bf16.mxu0 0
  %1314 = vmatpush2.bf16.msra.mxu0 0
  %1315 = vmatprep.subr.bf16.mxu0 0
  %1316 = vmatpush2.bf16.msra.mxu0 0
  %1317 = vmatprep.mubr.bf16.mxu0 0
  %1318 = vmatmul.mubr.bf16.gmra.mxu0 %v1283
  %v1319 = vpop.f32.mrf.mxu0
  %v1320 = vadd.f32 %v57, %v1319
  %v1321 = vpop.f32.mrf.mxu0
  %v1322 = vpop.f32.mrf.mxu0
  %v1323 = vpop.f32.mrf.mxu0
  %1324 = vdwg.mxu0
  %v1325 = vxor.u32 %v1320, 2147483648
  %v1326 = vmul.f32 %v1325, 1.442695
  %v1327 = vpow.pop %v1326
  %v1328 = vadd.f32 %v1327, 1.0
  %v1329 = vrcp.pop %v1328
  %v1330 = vmul.f32 1.0, %v1329
  %v1331 = vtanh.pop %v1320
  %v1332 = vmul.f32 %v1330, %v1186
  %1334 = vrot.lane.b32.xlu0 %v1331, 64
  %v1335 = vpop.permute.xlu0 %1334
  %v1337 = vmul.f32 %v1330, %v1335
  %1339 = vrot.lane.b32.xlu0 %v1337, 32
  %v1340 = vpop.permute.xlu0 %1339
  %v1342 = vadd.f32 %v1332, %v1340
  %v1343 = vtanh.pop %v1342
  %1345 = vrot.lane.b32.xlu0 %v1343, 64
  %v1346 = vpop.permute.xlu0 %1345
  %v1348 = vmul.f32 %v1330, %v1346
  %1350 = vrot.lane.b32.xlu0 %v1348, 32
  %v1351 = vpop.permute.xlu0 %1350
  %s1353 = scalar_lea.vmem %s6, 56
  %1354 = vst.msk [vmem:[%s1353] sm:$0xff] %vm79, %v1351
  %1355 = vst.msk [vmem:[#allocation2] sm:$0xff] %vm79, %v1275
  %1357 = vrot.lane.b32.xlu0 %v1266, 96
  %v1358 = vpop.permute.xlu0 %1357
  %1360 = vst.msk [vmem:[#allocation3] sm:$0xff] %vm79, %v1358
  %1361 = vst.msk [vmem:[%s61] sm:$0xff] %vm79, %v1351
  %1363 = vrot.lane.b32.xlu0 %v1342, 96
  %v1364 = vpop.permute.xlu0 %1363
  %1366 = vst.msk [vmem:[%s63] sm:$0xff] %vm79, %v1364
  %1367 = vst.msk [vmem:[%s7] sm:$0xff] %vm79, %v1275
  %1368 = vst.msk [vmem:[%s8] sm:$0xff] %vm79, %v1358
  %s1369 = scalar_lea.vmem %s7, 8
  %1370 = vst.msk [vmem:[%s1369] sm:$0xff] %vm79, %v1351
  %s1371 = scalar_lea.vmem %s8, 8
  %1372 = vst.msk [vmem:[%s1371] sm:$0xff] %vm79, %v1364
  // Predicated region
  $region30: #{rnn_decoder_forward.1} parent=0 // pred_check
    _
  $region31: #{rnn_decoder_forward.1} parent=0 // pred_check_branch
    %1374 = sbr.rel (0) target = $region33
  $region32: #{rnn_decoder_forward.1} parent=0 // pred_region
    _
  $region33: #{rnn_decoder_forward.1} parent=0 // pred_fallthru
    _
  // Predicated region
  $region34: #{rnn_decoder_forward.1} parent=0 // pred_check
    _
  $region35: #{rnn_decoder_forward.1} parent=0 // pred_check_branch
    %1376 = sbr.rel (0) target = $region37
  $region36: #{rnn_decoder_forward.1} parent=0 // pred_region
    _
  $region37: #{rnn_decoder_forward.1} parent=0 // pred_fallthru
    _
  // Predicated region
  $region38: #{rnn_decoder_forward.1} parent=0 // pred_check
    _
  $region39: #{rnn_decoder_forward.1} parent=0 // pred_check_branch
    %1378 = sbr.rel (0) target = $region41
  $region40: #{rnn_decoder_forward.1} parent=0 // pred_region
    _
  $region41: #{rnn_decoder_forward.1} parent=0 // pred_fallthru
    _
  // Predicated region
  $region42: #{rnn_decoder_forward.1} parent=0 // pred_check
    _
  $region43: #{rnn_decoder_forward.1} parent=0 // pred_check_branch
    %1380 = sbr.rel (0) target = $region45
  $region44: #{rnn_decoder_forward.1} parent=0 // pred_region
    _
  $region45: #{rnn_decoder_forward.1} parent=0 // pred_fallthru
    _
  // Predicated region
  $region46: #{rnn_decoder_forward.1} parent=0 // pred_check
    _
  $region47: #{rnn_decoder_forward.1} parent=0 // pred_check_branch
    %1382 = sbr.rel (0) target = $region49
  $region48: #{rnn_decoder_forward.1} parent=0 // pred_region
    _
  $region49: #{rnn_decoder_forward.1} parent=0 // pred_fallthru
    _
  // Predicated region
  $region50: #{rnn_decoder_forward.1} parent=0 // pred_check
    _
  $region51: #{rnn_decoder_forward.1} parent=0 // pred_check_branch
    %1384 = sbr.rel (0) target = $region53
  $region52: #{rnn_decoder_forward.1} parent=0 // pred_region
    _
  $region53: #{rnn_decoder_forward.1} parent=0 // pred_fallthru
    _

</llo_original>
